<compile_context>
chip_gen: v5e
topology: v5e:2x2
jax: 0.10.0
libtpu: 0.0.40
codegen_flags: <defaults>
</compile_context>

<pallas_src>
import functools

import jax
import jax.numpy as jnp
import numpy as np
from jax.experimental import pallas as pl
from jax.experimental.pallas import tpu as pltpu

TWIN_MARGIN = 0.5
OTHER_MARGIN = 0.3
_LANE = 128
_BIG = 1e9  # mask sentinel: relu(x - BIG) == 0 and relu(-BIG - x) == 0 for all real d
_HIGHEST = jax.lax.Precision.HIGHEST  # full-f32 MXU passes (keeps 1e-5 accuracy)


def _round_up(x, m):
    return ((x + m - 1) // m) * m


def _vmem_capacity_bytes():
    """Physical VMEM per core; conservative (v7x) fallback if the query fails."""
    try:
        info = pltpu.get_tpu_info()
        cap = getattr(info, "vmem_capacity_bytes", None)
        if cap:
            return int(cap)
    except Exception:
        pass
    return 64 * 1024 * 1024


# --------------------------------------------------------------------------- #
# Kernel 1: per-row distances -> margin-biased, mask-folded operand vectors.
# Grid: (row tiles [parallel], D tiles [arbitrary, accumulated]).
# --------------------------------------------------------------------------- #
def _distance_kernel(e1_ref, e2_ref, same_col_ref, twin_row_ref, other_row_ref,
                     col_twin_ref, col_other_ref, row_twin_ref, row_other_ref,
                     d2_acc_ref):
    k = pl.program_id(1)

    @pl.when(k == 0)
    def _init():
        d2_acc_ref[...] = jnp.zeros_like(d2_acc_ref)

    diff = e1_ref[...] - e2_ref[...]                                  # [TR, TK]
    ones_k = jnp.ones((diff.shape[1], 1), jnp.float32)
    # Row-wise squared distance on the MXU (idle slot) instead of an XLU reduce.
    d2_acc_ref[...] += jnp.dot(diff * diff, ones_k,
                               preferred_element_type=jnp.float32,
                               precision=_HIGHEST)                    # [TR, 1]

    @pl.when(k == pl.num_programs(1) - 1)
    def _finalize():
        d_col = jnp.sqrt(d2_acc_ref[...])                             # [TR, 1]
        d_row = jnp.transpose(d_col, (1, 0))                          # [1, TR]
        same_c = same_col_ref[...]                                     # [TR, 1]
        # Column operands: margin pre-biased, non-"same" rows masked to -BIG.
        col_twin_ref[...] = jnp.where(same_c > 0.0, d_col + TWIN_MARGIN, -_BIG)
        col_other_ref[...] = jnp.where(same_c > 0.0, d_col + OTHER_MARGIN, -_BIG)
        # Row operands: non-twin / non-other columns masked to +BIG.
        row_twin_ref[...] = jnp.where(twin_row_ref[...] > 0.0, d_row, _BIG)
        row_other_ref[...] = jnp.where(other_row_ref[...] > 0.0, d_row, _BIG)


# --------------------------------------------------------------------------- #
# Kernel 2: O(B^2) pairwise hinge sweep.
# Grid: (2,) "parallel" -> megacore split on v7x; in-kernel fori_loop over the
# column tiles owned by each core (no per-step grid overhead).
# --------------------------------------------------------------------------- #
def _pairwise_kernel(tile_j, tiles_per_core,
                     col_twin_ref, col_other_ref, row_twin_ref, row_other_ref,
                     out_ref):
    c = pl.program_id(0)
    b_pad = col_twin_ref.shape[0]
    # Hoisted out of the loop (JAX does not CSE broadcast_in_dim).
    ones_row = jnp.ones((1, b_pad), jnp.float32)
    base = c * tiles_per_core

    def body(i, carry):
        acc_t, acc_o = carry
        j0 = pl.multiple_of((base + i) * tile_j, tile_j)
        row_t = row_twin_ref[:, pl.ds(j0, tile_j)]                    # [1, TJ]
        row_o = row_other_ref[:, pl.ds(j0, tile_j)]                   # [1, TJ]
        # Hot path: 2 subs + 2 maxes per pair (margins & label masks pre-folded,
        # so every masked-out pair contributes exactly 0).
        r_twin = jnp.maximum(col_twin_ref[...] - row_t, 0.0)          # [B, TJ]
        r_other = jnp.maximum(col_other_ref[...] - row_o, 0.0)        # [B, TJ]
        # Sublane reduction on the MXU (idle slot); lane reduction on the XLU.
        t_t = jnp.dot(ones_row, r_twin,
                      preferred_element_type=jnp.float32, precision=_HIGHEST)
        t_o = jnp.dot(ones_row, r_other,
                      preferred_element_type=jnp.float32, precision=_HIGHEST)
        return acc_t + jnp.sum(t_t), acc_o + jnp.sum(t_o)

    acc_t, acc_o = jax.lax.fori_loop(
        0, tiles_per_core, body, (jnp.float32(0.0), jnp.float32(0.0)),
        unroll=(tiles_per_core <= 8))

    lane = jax.lax.broadcasted_iota(jnp.int32, (1, 1, _LANE), 2)
    out_ref[...] = (jnp.where(lane == 0, acc_t, 0.0)
                    + jnp.where(lane == 1, acc_o, 0.0))


def twin_aware_margin_loss(embeddings1, embeddings2, labels):
    """embeddings1, embeddings2: [B, D] float ; labels: [B] int (0=same, 1=twin, 2=other)."""
    B, D = embeddings1.shape
    # b_pad multiple of 256 so the two-core column split is always exact.
    b_pad = _round_up(max(B, 1), 2 * _LANE)
    d_pad = _round_up(max(D, 1), _LANE)

    vmem_cap = _vmem_capacity_bytes()
    vmem_limit = max(int(0.85 * vmem_cap), 16 * 1024 * 1024)          # v7x-safe cap

    # Fixed VMEM in the pairwise kernel: 2 lane-padded column inputs + 2 row
    # inputs, double-buffered by the pipeline.
    fixed_vmem = 4 * 2 * (2 * b_pad * _LANE + 2 * 8 * b_pad)
    # Per-tile temporaries ~ 4 x [b_pad, tile_j] f32 (two diffs + two hinges).
    tile_j = _LANE
    for t in (512, 256, 128):
        if b_pad % (2 * t) != 0:
            continue
        if fixed_vmem + 16 * b_pad * t + (2 << 20) <= vmem_limit:
            tile_j = t
            break
    n_j = b_pad // tile_j
    tiles_per_core = n_j // 2

    # Distance-prologue tiling.
    tile_r = min(b_pad, 256)
    tile_k = next(t for t in (512, 256, 128) if d_pad % t == 0)

    # ---- padded inputs & label masks (padded rows get sentinel label 3) ------
    e1_p = jnp.zeros((b_pad, d_pad), jnp.float32).at[:B, :D].set(
        embeddings1.astype(jnp.float32))
    e2_p = jnp.zeros((b_pad, d_pad), jnp.float32).at[:B, :D].set(
        embeddings2.astype(jnp.float32))
    lab_p = jnp.full((b_pad,), 3, jnp.int32).at[:B].set(labels.astype(jnp.int32))
    same_col = (lab_p == 0).astype(jnp.float32).reshape(b_pad, 1)
    twin_row = (lab_p == 1).astype(jnp.float32).reshape(1, b_pad)
    other_row = (lab_p == 2).astype(jnp.float32).reshape(1, b_pad)

    # ---- kernel 1: distances + operand folding -------------------------------
    dist_cost = pl.CostEstimate(
        flops=int(6 * b_pad * d_pad),
        transcendentals=int(b_pad),
        bytes_accessed=int(4 * (2 * b_pad * d_pad + 7 * b_pad)),
    )
    dist_grid = pltpu.PrefetchScalarGridSpec(
        num_scalar_prefetch=0,
        grid=(b_pad // tile_r, d_pad // tile_k),
        in_specs=[
            pl.BlockSpec((tile_r, tile_k), lambda r, k: (r, k)),   # e1
            pl.BlockSpec((tile_r, tile_k), lambda r, k: (r, k)),   # e2
            pl.BlockSpec((tile_r, 1), lambda r, k: (r, 0)),        # same mask (col)
            pl.BlockSpec((1, tile_r), lambda r, k: (0, r)),        # twin mask (row)
            pl.BlockSpec((1, tile_r), lambda r, k: (0, r)),        # other mask (row)
        ],
        out_specs=[
            pl.BlockSpec((tile_r, 1), lambda r, k: (r, 0)),        # col_twin
            pl.BlockSpec((tile_r, 1), lambda r, k: (r, 0)),        # col_other
            pl.BlockSpec((1, tile_r), lambda r, k: (0, r)),        # row_twin
            pl.BlockSpec((1, tile_r), lambda r, k: (0, r)),        # row_other
        ],
        scratch_shapes=[pltpu.VMEM((tile_r, 1), jnp.float32)],     # d^2 accumulator
    )
    col_twin, col_other, row_twin, row_other = pl.pallas_call(
        _distance_kernel,
        out_shape=(
            jax.ShapeDtypeStruct((b_pad, 1), jnp.float32),
            jax.ShapeDtypeStruct((b_pad, 1), jnp.float32),
            jax.ShapeDtypeStruct((1, b_pad), jnp.float32),
            jax.ShapeDtypeStruct((1, b_pad), jnp.float32),
        ),
        grid_spec=dist_grid,
        compiler_params=pltpu.CompilerParams(
            dimension_semantics=("parallel", "arbitrary"),
            vmem_limit_bytes=vmem_limit,
        ),
        cost_estimate=dist_cost,
    )(e1_p, e2_p, same_col, twin_row, other_row)

    # ---- kernel 2: pairwise hinge sweep (2-way core split) -------------------
    pair_cost = pl.CostEstimate(
        flops=int(8 * b_pad * b_pad),
        transcendentals=0,
        bytes_accessed=int(4 * (6 * b_pad + 2 * _LANE)),
    )
    pair_grid = pltpu.PrefetchScalarGridSpec(
        num_scalar_prefetch=0,
        grid=(2,),
        in_specs=[
            pl.BlockSpec((b_pad, 1), lambda c: (0, 0)),            # col_twin
            pl.BlockSpec((b_pad, 1), lambda c: (0, 0)),            # col_other
            pl.BlockSpec((1, b_pad), lambda c: (0, 0)),            # row_twin
            pl.BlockSpec((1, b_pad), lambda c: (0, 0)),            # row_other
        ],
        out_specs=pl.BlockSpec((1, 1, _LANE), lambda c: (c, 0, 0)),
    )
    partials = pl.pallas_call(
        functools.partial(_pairwise_kernel, tile_j, tiles_per_core),
        out_shape=jax.ShapeDtypeStruct((2, 1, _LANE), jnp.float32),
        grid_spec=pair_grid,
        compiler_params=pltpu.CompilerParams(
            dimension_semantics=("parallel",),
            vmem_limit_bytes=vmem_limit,
        ),
        cost_estimate=pair_cost,
    )(col_twin, col_other, row_twin, row_other)

    # ---- scalar epilogue (group means + non-empty gating) --------------------
    twin_sum = jnp.sum(partials[:, 0, 0])
    other_sum = jnp.sum(partials[:, 0, 1])
    labels_i = labels.astype(jnp.int32)
    n_same = jnp.sum((labels_i == 0).astype(jnp.float32))
    n_twin = jnp.sum((labels_i == 1).astype(jnp.float32))
    n_other = jnp.sum((labels_i == 2).astype(jnp.float32))
    twin_cnt = n_same * n_twin
    other_cnt = n_same * n_other
    twin_loss = jnp.where(twin_cnt > 0.0, twin_sum / jnp.maximum(twin_cnt, 1.0), 0.0)
    other_loss = jnp.where(other_cnt > 0.0, other_sum / jnp.maximum(other_cnt, 1.0), 0.0)
    # TODO(synk): for heavily skewed label distributions, compact rows (label==0)
    # and columns (label in {1,2}) on the host and sweep only n_same x (n_twin+n_other).
    return (twin_loss + other_loss).astype(jnp.float32)


def _reference_loss(e1, e2, labels):
    # Plain NumPy reference mirroring the PyTorch forward (eager, concrete arrays).
    d = np.linalg.norm(np.asarray(e1) - np.asarray(e2), axis=1)
    labels = np.asarray(labels)
    same_d = d[labels == 0]
    twin_d = d[labels == 1]
    other_d = d[labels == 2]
    loss = 0.0
    if len(same_d) > 0 and len(twin_d) > 0:
        loss += np.clip(TWIN_MARGIN + same_d[:, None] - twin_d[None, :], 0, None).mean()
    if len(same_d) > 0 and len(other_d) > 0:
        loss += np.clip(OTHER_MARGIN + same_d[:, None] - other_d[None, :], 0, None).mean()
    return np.float32(loss)


if __name__ == "__main__":
    B, D = 8, 32
    key = jax.random.PRNGKey(0)
    k1, k2 = jax.random.split(key)
    e1 = jax.random.normal(k1, (B, D), dtype=jnp.float32)
    e2 = jax.random.normal(k2, (B, D), dtype=jnp.float32)
    # Normalized embeddings, as the module docstring assumes.
    e1 = e1 / jnp.linalg.norm(e1, axis=1, keepdims=True)
    e2 = e2 / jnp.linalg.norm(e2, axis=1, keepdims=True)
    labels = jnp.array([0, 0, 0, 1, 1, 2, 2, 2], dtype=jnp.int32)

    loss = twin_aware_margin_loss(e1, e2, labels)
    loss = jax.block_until_ready(loss)

    ref = _reference_loss(e1, e2, labels)
    np.testing.assert_allclose(np.asarray(loss), ref, rtol=1e-4, atol=1e-5)

    print("KERNEL_OK")
</pallas_src>

<mosaic_0001>
module attributes {stable_mosaic.version = 11 : i64} {
  func.func @_distance_kernel(%arg0: i32, %arg1: i32, %arg2: memref<256x128xf32, #tpu.memory_space<vmem>>, %arg3: memref<256x128xf32, #tpu.memory_space<vmem>>, %arg4: memref<256x1xf32, #tpu.memory_space<vmem>>, %arg5: memref<1x256xf32, #tpu.memory_space<vmem>>, %arg6: memref<1x256xf32, #tpu.memory_space<vmem>>, %arg7: memref<256x1xf32, #tpu.memory_space<vmem>>, %arg8: memref<256x1xf32, #tpu.memory_space<vmem>>, %arg9: memref<1x256xf32, #tpu.memory_space<vmem>>, %arg10: memref<1x256xf32, #tpu.memory_space<vmem>>, %arg11: memref<256x1xf32, #tpu.memory_space<vmem>>) attributes {dimension_semantics = [#tpu.dimension_semantics<parallel>, #tpu.dimension_semantics<arbitrary>], iteration_bounds = array<i64: 1, 1>, scalar_prefetch = 0 : i64, scratch_operands = 1 : i64, tpu.core_type = #tpu.core_type<tc>, window_params = [{transform_indices = @transform_0, window_bounds = array<i64: 256, 128>}, {transform_indices = @transform_1, window_bounds = array<i64: 256, 128>}, {transform_indices = @transform_2, window_bounds = array<i64: 256, 1>}, {transform_indices = @transform_3, window_bounds = array<i64: 1, 256>}, {transform_indices = @transform_4, window_bounds = array<i64: 1, 256>}, {transform_indices = @transform_5, window_bounds = array<i64: 256, 1>}, {transform_indices = @transform_6, window_bounds = array<i64: 256, 1>}, {transform_indices = @transform_7, window_bounds = array<i64: 1, 256>}, {transform_indices = @transform_8, window_bounds = array<i64: 1, 256>}]} {
    %c0_i32 = arith.constant 0 : i32
    %0 = arith.cmpi eq, %arg1, %c0_i32 : i32
    %1 = arith.extui %0 : i1 to i32
    %c0_i32_0 = arith.constant 0 : i32
    %2 = arith.cmpi ne, %1, %c0_i32_0 : i32
    scf.if %2 {
      %cst_11 = arith.constant 0.000000e+00 : f32
      %15 = vector.broadcast %cst_11 : f32 to vector<256x1xf32>
      %c0_12 = arith.constant 0 : index
      %c0_13 = arith.constant 0 : index
      %16 = vector.load %arg11[%c0_12, %c0_13] : memref<256x1xf32, #tpu.memory_space<vmem>>, vector<256x1xf32>
      tpu.vector_store %arg11[%c0_12, %c0_13], %15 {strides = array<i32>} : memref<256x1xf32, #tpu.memory_space<vmem>>, vector<256x1xf32>,
    } else {
    }
    %c0 = arith.constant 0 : index
    %c0_1 = arith.constant 0 : index
    %3 = vector.load %arg2[%c0, %c0_1] : memref<256x128xf32, #tpu.memory_space<vmem>>, vector<256x128xf32>
    %c0_2 = arith.constant 0 : index
    %c0_3 = arith.constant 0 : index
    %4 = vector.load %arg3[%c0_2, %c0_3] : memref<256x128xf32, #tpu.memory_space<vmem>>, vector<256x128xf32>
    %5 = arith.subf %3, %4 : vector<256x128xf32>
    %cst = arith.constant 1.000000e+00 : f32
    %6 = vector.broadcast %cst : f32 to vector<128x1xf32>
    %c0_4 = arith.constant 0 : index
    %c0_5 = arith.constant 0 : index
    %7 = vector.load %arg11[%c0_4, %c0_5] : memref<256x1xf32, #tpu.memory_space<vmem>>, vector<256x1xf32>
    %8 = arith.mulf %5, %5 : vector<256x128xf32>
    %cst_6 = arith.constant dense<0.000000e+00> : vector<256x1xf32>
    %9 = tpu.matmul %8, %6, %cst_6 {dimension_numbers = #tpu.dot_dimension_numbers<[1], [0], [0], [1], [0, 0, 1, 1], [], []>, precision = #tpu.contract_precision<fp32>} : vector<256x128xf32>, vector<128x1xf32>, vector<256x1xf32> -> vector<256x1xf32>
    %10 = arith.addf %7, %9 : vector<256x1xf32>
    %c0_7 = arith.constant 0 : index
    %c0_8 = arith.constant 0 : index
    %11 = vector.load %arg11[%c0_7, %c0_8] : memref<256x1xf32, #tpu.memory_space<vmem>>, vector<256x1xf32>
    tpu.vector_store %arg11[%c0_7, %c0_8], %10 {strides = array<i32>} : memref<256x1xf32, #tpu.memory_space<vmem>>, vector<256x1xf32>,
    %c0_i32_9 = arith.constant 0 : i32
    %12 = arith.cmpi eq, %arg1, %c0_i32_9 : i32
    %13 = arith.extui %12 : i1 to i32
    %c0_i32_10 = arith.constant 0 : i32
    %14 = arith.cmpi ne, %13, %c0_i32_10 : i32
    scf.if %14 {
      %c0_11 = arith.constant 0 : index
      %c0_12 = arith.constant 0 : index
      %15 = vector.load %arg11[%c0_11, %c0_12] : memref<256x1xf32, #tpu.memory_space<vmem>>, vector<256x1xf32>
      %16 = math.sqrt %15 : vector<256x1xf32>
      %17 = tpu.transpose %16, [1, 0] : vector<256x1xf32> -> vector<1x256xf32>
      %c0_13 = arith.constant 0 : index
      %c0_14 = arith.constant 0 : index
      %18 = vector.load %arg4[%c0_13, %c0_14] : memref<256x1xf32, #tpu.memory_space<vmem>>, vector<256x1xf32>
      %cst_15 = arith.constant 0.000000e+00 : f32
      %19 = vector.broadcast %cst_15 : f32 to vector<256x1xf32>
      %20 = arith.cmpf ogt, %18, %19 : vector<256x1xf32>
      %cst_16 = arith.constant 5.000000e-01 : f32
      %21 = vector.broadcast %cst_16 : f32 to vector<256x1xf32>
      %22 = arith.addf %16, %21 : vector<256x1xf32>
      %cst_17 = arith.constant -1.000000e+09 : f32
      %23 = vector.broadcast %cst_17 : f32 to vector<256x1xf32>
      %24 = arith.select %20, %22, %23 : vector<256x1xi1>, vector<256x1xf32>
      %c0_18 = arith.constant 0 : index
      %c0_19 = arith.constant 0 : index
      %25 = vector.load %arg7[%c0_18, %c0_19] : memref<256x1xf32, #tpu.memory_space<vmem>>, vector<256x1xf32>
      tpu.vector_store %arg7[%c0_18, %c0_19], %24 {strides = array<i32>} : memref<256x1xf32, #tpu.memory_space<vmem>>, vector<256x1xf32>,
      %cst_20 = arith.constant 0.000000e+00 : f32
      %26 = vector.broadcast %cst_20 : f32 to vector<256x1xf32>
      %27 = arith.cmpf ogt, %18, %26 : vector<256x1xf32>
      %cst_21 = arith.constant 3.000000e-01 : f32
      %28 = vector.broadcast %cst_21 : f32 to vector<256x1xf32>
      %29 = arith.addf %16, %28 : vector<256x1xf32>
      %cst_22 = arith.constant -1.000000e+09 : f32
      %30 = vector.broadcast %cst_22 : f32 to vector<256x1xf32>
      %31 = arith.select %27, %29, %30 : vector<256x1xi1>, vector<256x1xf32>
      %c0_23 = arith.constant 0 : index
      %c0_24 = arith.constant 0 : index
      %32 = vector.load %arg8[%c0_23, %c0_24] : memref<256x1xf32, #tpu.memory_space<vmem>>, vector<256x1xf32>
      tpu.vector_store %arg8[%c0_23, %c0_24], %31 {strides = array<i32>} : memref<256x1xf32, #tpu.memory_space<vmem>>, vector<256x1xf32>,
      %c0_25 = arith.constant 0 : index
      %c0_26 = arith.constant 0 : index
      %33 = vector.load %arg5[%c0_25, %c0_26] : memref<1x256xf32, #tpu.memory_space<vmem>>, vector<1x256xf32>
      %cst_27 = arith.constant 0.000000e+00 : f32
      %34 = vector.broadcast %cst_27 : f32 to vector<1x256xf32>
      %35 = arith.cmpf ogt, %33, %34 : vector<1x256xf32>
      %cst_28 = arith.constant 1.000000e+09 : f32
      %36 = vector.broadcast %cst_28 : f32 to vector<1x256xf32>
      %37 = arith.select %35, %17, %36 : vector<1x256xi1>, vector<1x256xf32>
      %c0_29 = arith.constant 0 : index
      %c0_30 = arith.constant 0 : index
      %38 = vector.load %arg9[%c0_29, %c0_30] : memref<1x256xf32, #tpu.memory_space<vmem>>, vector<1x256xf32>
      tpu.vector_store %arg9[%c0_29, %c0_30], %37 {strides = array<i32>} : memref<1x256xf32, #tpu.memory_space<vmem>>, vector<1x256xf32>,
      %c0_31 = arith.constant 0 : index
      %c0_32 = arith.constant 0 : index
      %39 = vector.load %arg6[%c0_31, %c0_32] : memref<1x256xf32, #tpu.memory_space<vmem>>, vector<1x256xf32>
      %cst_33 = arith.constant 0.000000e+00 : f32
      %40 = vector.broadcast %cst_33 : f32 to vector<1x256xf32>
      %41 = arith.cmpf ogt, %39, %40 : vector<1x256xf32>
      %cst_34 = arith.constant 1.000000e+09 : f32
      %42 = vector.broadcast %cst_34 : f32 to vector<1x256xf32>
      %43 = arith.select %41, %17, %42 : vector<1x256xi1>, vector<1x256xf32>
      %c0_35 = arith.constant 0 : index
      %c0_36 = arith.constant 0 : index
      %44 = vector.load %arg10[%c0_35, %c0_36] : memref<1x256xf32, #tpu.memory_space<vmem>>, vector<1x256xf32>
      tpu.vector_store %arg10[%c0_35, %c0_36], %43 {strides = array<i32>} : memref<1x256xf32, #tpu.memory_space<vmem>>, vector<1x256xf32>,
    } else {
    }
    return
  }
  func.func @transform_0(%arg0: i32, %arg1: i32) -> (i32, i32) {
    %c0_i32 = arith.constant 0 : i32
    return %arg0, %arg1 : i32, i32
  }
  func.func @transform_1(%arg0: i32, %arg1: i32) -> (i32, i32) {
    %c0_i32 = arith.constant 0 : i32
    return %arg0, %arg1 : i32, i32
  }
  func.func @transform_2(%arg0: i32, %arg1: i32) -> (i32, i32) {
    %c0_i32 = arith.constant 0 : i32
    %c0_i32_0 = arith.constant 0 : i32
    return %arg0, %c0_i32 : i32, i32
  }
  func.func @transform_3(%arg0: i32, %arg1: i32) -> (i32, i32) {
    %c0_i32 = arith.constant 0 : i32
    %c0_i32_0 = arith.constant 0 : i32
    return %c0_i32, %arg0 : i32, i32
  }
  func.func @transform_4(%arg0: i32, %arg1: i32) -> (i32, i32) {
    %c0_i32 = arith.constant 0 : i32
    %c0_i32_0 = arith.constant 0 : i32
    return %c0_i32, %arg0 : i32, i32
  }
  func.func @transform_5(%arg0: i32, %arg1: i32) -> (i32, i32) {
    %c0_i32 = arith.constant 0 : i32
    %c0_i32_0 = arith.constant 0 : i32
    return %arg0, %c0_i32 : i32, i32
  }
  func.func @transform_6(%arg0: i32, %arg1: i32) -> (i32, i32) {
    %c0_i32 = arith.constant 0 : i32
    %c0_i32_0 = arith.constant 0 : i32
    return %arg0, %c0_i32 : i32, i32
  }
  func.func @transform_7(%arg0: i32, %arg1: i32) -> (i32, i32) {
    %c0_i32 = arith.constant 0 : i32
    %c0_i32_0 = arith.constant 0 : i32
    return %c0_i32, %arg0 : i32, i32
  }
  func.func @transform_8(%arg0: i32, %arg1: i32) -> (i32, i32) {
    %c0_i32 = arith.constant 0 : i32
    %c0_i32_0 = arith.constant 0 : i32
    return %c0_i32, %arg0 : i32, i32
  }
}

</mosaic_0001>

<llo_original>
// kernel: tpu_custom_call.1
$region0: #{tpu_custom_call.1}
  #allocation0 [shape = 'u32[]', space=smem, size = 0x4, offset = 0x4, fixed_abs, tag = 'smem constant byte address 0x4 - core index']
  #allocation1 [shape = 'u32[72,128]{1,0:T(1,128)}', space=vmem, size = 0x9000, scoped, tag = 'internal scratch']
  #allocation2 [shape = 'f32[256,1]{1,0:T(8,128)}', space=vmem, size = 0x20000, scoped, tag = 'scratch operand']
  %s0 = inlined_call_operand.vmem [shape: f32[256,128], index: 0, kind: input, shape index: {}]
  %s1 = inlined_call_operand.hbm [shape: f32[256,128], index: 1, kind: input, shape index: {}]
  %s2 = inlined_call_operand.vmem [shape: f32[256,1], index: 2, kind: input, shape index: {}]
  %s3 = inlined_call_operand.vmem [shape: f32[1,256], index: 3, kind: input, shape index: {}]
  %s4 = inlined_call_operand.vmem [shape: f32[1,256], index: 4, kind: input, shape index: {}]
  %s5 = inlined_call_operand.vmem [shape: f32[256,1], index: 5, kind: output, shape index: {0}]
  %s6 = inlined_call_operand.vmem [shape: f32[256,1], index: 6, kind: output, shape index: {1}]
  %s7 = inlined_call_operand.hbm [shape: f32[1,256], index: 7, kind: output, shape index: {2}]
  %s8 = inlined_call_operand.hbm [shape: f32[1,256], index: 8, kind: output, shape index: {3}]
  %9 = xla_tuple %s5, %s6, %s7, %s8
  %s10 = sld [smem:[#allocation0]]
  $region66: #{tpu_custom_call.1} parent=0
    _
  %s12 = ssub.s32 1, %s10
  %s13 = scalar_select 0, %s12, %s10
  $region1: #{tpu_custom_call.1} parent=0
    #allocation3 [shape = 'u8[131072]{0}', space=vmem, size = 0x20000, scoped, tag = 'input window, operand 1, single buffered']
    #allocation4 [shape = 's32[1]{0}', space=sflag, size = 0x4, scoped, tag = 'scoped memory for tpu_custom_call.1']
    #allocation5 [shape = 's32[1]{0}', space=sflag, size = 0x4, scoped, tag = 'scoped memory for tpu_custom_call.1']
    #allocation6 [shape = 'u8[1024]{0}', space=vmem, size = 0x400, scoped, tag = 'output window, operand 2, single buffered']
    #allocation7 [shape = 'u8[1024]{0}', space=vmem, size = 0x400, scoped, tag = 'output window, operand 3, single buffered']
    #allocation8 [shape = 's32[1]{0}', space=sflag, size = 0x4, scoped, tag = 'scoped memory for tpu_custom_call.1']
    %14 = vsyncpa [#allocation4], 0
    %15 = vsyncpa [#allocation5], 0
    %16 = vsyncpa [#allocation8], 0
    // Predicated region
    $region2: #{tpu_custom_call.1} parent=1 // pred_check
      _
    $region3: #{tpu_custom_call.1} parent=1 // pred_check_branch
      %18 = sbr.rel (0) target = $region5
    $region4: #{tpu_custom_call.1} parent=1 // pred_region
      _
    $region5: #{tpu_custom_call.1} parent=1 // pred_fallthru
      _
    // Predicated region
    $region6: #{tpu_custom_call.1} parent=1 // pred_check
      _
    $region7: #{tpu_custom_call.1} parent=1 // pred_check_branch
      %20 = sbr.rel (0) target = $region9
    $region8: #{tpu_custom_call.1} parent=1 // pred_region
      %22 = vsyncadd [#allocation4], 0
      %s23 = sshll.u32 %s1, 4
      %s24 = int_to_ptr.hbm [resolvable:$true] %s23
      %s25 = sshll.u32 [#allocation3], 4
      %s26 = int_to_ptr.vmem [resolvable:$true] %s25
      %31 = dma.hbm_to_vmem [thread:$0]  %s24, 4096, %s26, [#allocation4], 128, 128, 8
    $region9: #{tpu_custom_call.1} parent=1 // pred_fallthru
      _
    // Predicated region
    $region10: #{tpu_custom_call.1} parent=1 // pred_check
      _
    $region11: #{tpu_custom_call.1} parent=1 // pred_check_branch
      %33 = sbr.rel (0) target = $region13
    $region12: #{tpu_custom_call.1} parent=1 // pred_region
      _
    $region13: #{tpu_custom_call.1} parent=1 // pred_fallthru
      _
    // Predicated region
    $region14: #{tpu_custom_call.1} parent=1 // pred_check
      _
    $region15: #{tpu_custom_call.1} parent=1 // pred_check_branch
      %35 = sbr.rel (0) target = $region17
    $region16: #{tpu_custom_call.1} parent=1 // pred_region
      _
    $region17: #{tpu_custom_call.1} parent=1 // pred_fallthru
      _
    // Predicated region
    $region18: #{tpu_custom_call.1} parent=1 // pred_check
      _
    $region19: #{tpu_custom_call.1} parent=1 // pred_check_branch
      %37 = sbr.rel (0) target = $region21
    $region20: #{tpu_custom_call.1} parent=1 // pred_region
      _
    $region21: #{tpu_custom_call.1} parent=1 // pred_fallthru
      _
    // Predicated region
    $region22: #{tpu_custom_call.1} parent=1 // pred_check
      _
    $region23: #{tpu_custom_call.1} parent=1 // pred_check_branch
      %39 = sbr.rel (0) target = $region25
    $region24: #{tpu_custom_call.1} parent=1 // pred_region
      %41 = dma.done [#allocation4], 4096
    $region25: #{tpu_custom_call.1} parent=1 // pred_fallthru
      _
    %p42 = scmp.eq.s32.totalorder 0, 0
    // Predicated region
    $region26: #{tpu_custom_call.1} parent=1 // pred_check
      %p43 = pneg %p42
    $region27: #{tpu_custom_call.1} parent=1 // pred_check_branch
      %45 = sbr.rel (%p43) target = $region29
    $region28: #{tpu_custom_call.1} parent=1 // pred_region
      %vm46 = vcmask 7168
      %47 = vst.msk [vmem:[#allocation2] sm:$0xff] %vm46, 0.0
      %48 = vst.msk [vmem:[#allocation2 + $0x8] sm:$0xff] %vm46, 0.0
      %49 = vst.msk [vmem:[#allocation2 + $0x10] sm:$0xff] %vm46, 0.0
      %50 = vst.msk [vmem:[#allocation2 + $0x18] sm:$0xff] %vm46, 0.0
      %51 = vst.msk [vmem:[#allocation2 + $0x20] sm:$0xff] %vm46, 0.0
      %52 = vst.msk [vmem:[#allocation2 + $0x28] sm:$0xff] %vm46, 0.0
      %53 = vst.msk [vmem:[#allocation2 + $0x30] sm:$0xff] %vm46, 0.0
      %54 = vst.msk [vmem:[#allocation2 + $0x38] sm:$0xff] %vm46, 0.0
      %55 = vst.msk [vmem:[#allocation2 + $0x40] sm:$0xff] %vm46, 0.0
      %56 = vst.msk [vmem:[#allocation2 + $0x48] sm:$0xff] %vm46, 0.0
      %57 = vst.msk [vmem:[#allocation2 + $0x50] sm:$0xff] %vm46, 0.0
      %58 = vst.msk [vmem:[#allocation2 + $0x58] sm:$0xff] %vm46, 0.0
      %59 = vst.msk [vmem:[#allocation2 + $0x60] sm:$0xff] %vm46, 0.0
      %60 = vst.msk [vmem:[#allocation2 + $0x68] sm:$0xff] %vm46, 0.0
      %61 = vst.msk [vmem:[#allocation2 + $0x70] sm:$0xff] %vm46, 0.0
      %62 = vst.msk [vmem:[#allocation2 + $0x78] sm:$0xff] %vm46, 0.0
      %63 = vst.msk [vmem:[#allocation2 + $0x80] sm:$0xff] %vm46, 0.0
      %64 = vst.msk [vmem:[#allocation2 + $0x88] sm:$0xff] %vm46, 0.0
      %65 = vst.msk [vmem:[#allocation2 + $0x90] sm:$0xff] %vm46, 0.0
      %66 = vst.msk [vmem:[#allocation2 + $0x98] sm:$0xff] %vm46, 0.0
      %67 = vst.msk [vmem:[#allocation2 + $0xa0] sm:$0xff] %vm46, 0.0
      %68 = vst.msk [vmem:[#allocation2 + $0xa8] sm:$0xff] %vm46, 0.0
      %69 = vst.msk [vmem:[#allocation2 + $0xb0] sm:$0xff] %vm46, 0.0
      %70 = vst.msk [vmem:[#allocation2 + $0xb8] sm:$0xff] %vm46, 0.0
      %71 = vst.msk [vmem:[#allocation2 + $0xc0] sm:$0xff] %vm46, 0.0
      %72 = vst.msk [vmem:[#allocation2 + $0xc8] sm:$0xff] %vm46, 0.0
      %73 = vst.msk [vmem:[#allocation2 + $0xd0] sm:$0xff] %vm46, 0.0
      %74 = vst.msk [vmem:[#allocation2 + $0xd8] sm:$0xff] %vm46, 0.0
      %75 = vst.msk [vmem:[#allocation2 + $0xe0] sm:$0xff] %vm46, 0.0
      %76 = vst.msk [vmem:[#allocation2 + $0xe8] sm:$0xff] %vm46, 0.0
      %77 = vst.msk [vmem:[#allocation2 + $0xf0] sm:$0xff] %vm46, 0.0
      %78 = vst.msk [vmem:[#allocation2 + $0xf8] sm:$0xff] %vm46, 0.0
    $region29: #{tpu_custom_call.1} parent=1 // pred_fallthru
      _
    %v79 = vld [vmem:[%s0] sm:$0xff]
    %v80 = vld [vmem:[%s0 + $0x8] sm:$0xff]
    %v81 = vld [vmem:[%s0 + $0x10] sm:$0xff]
    %v82 = vld [vmem:[%s0 + $0x18] sm:$0xff]
    %v83 = vld [vmem:[%s0 + $0x20] sm:$0xff]
    %v84 = vld [vmem:[%s0 + $0x28] sm:$0xff]
    %v85 = vld [vmem:[%s0 + $0x30] sm:$0xff]
    %v86 = vld [vmem:[%s0 + $0x38] sm:$0xff]
    %v87 = vld [vmem:[%s0 + $0x40] sm:$0xff]
    %v88 = vld [vmem:[%s0 + $0x48] sm:$0xff]
    %v89 = vld [vmem:[%s0 + $0x50] sm:$0xff]
    %v90 = vld [vmem:[%s0 + $0x58] sm:$0xff]
    %v91 = vld [vmem:[%s0 + $0x60] sm:$0xff]
    %v92 = vld [vmem:[%s0 + $0x68] sm:$0xff]
    %v93 = vld [vmem:[%s0 + $0x70] sm:$0xff]
    %v94 = vld [vmem:[%s0 + $0x78] sm:$0xff]
    %v95 = vld [vmem:[%s0 + $0x80] sm:$0xff]
    %v96 = vld [vmem:[%s0 + $0x88] sm:$0xff]
    %v97 = vld [vmem:[%s0 + $0x90] sm:$0xff]
    %v98 = vld [vmem:[%s0 + $0x98] sm:$0xff]
    %v99 = vld [vmem:[%s0 + $0xa0] sm:$0xff]
    %v100 = vld [vmem:[%s0 + $0xa8] sm:$0xff]
    %v101 = vld [vmem:[%s0 + $0xb0] sm:$0xff]
    %v102 = vld [vmem:[%s0 + $0xb8] sm:$0xff]
    %v103 = vld [vmem:[%s0 + $0xc0] sm:$0xff]
    %v104 = vld [vmem:[%s0 + $0xc8] sm:$0xff]
    %v105 = vld [vmem:[%s0 + $0xd0] sm:$0xff]
    %v106 = vld [vmem:[%s0 + $0xd8] sm:$0xff]
    %v107 = vld [vmem:[%s0 + $0xe0] sm:$0xff]
    %v108 = vld [vmem:[%s0 + $0xe8] sm:$0xff]
    %v109 = vld [vmem:[%s0 + $0xf0] sm:$0xff]
    %v110 = vld [vmem:[%s0 + $0xf8] sm:$0xff]
    %v111 = vld [vmem:[#allocation3] sm:$0xff]
    %v112 = vld [vmem:[#allocation3 + $0x8] sm:$0xff]
    %v113 = vld [vmem:[#allocation3 + $0x10] sm:$0xff]
    %v114 = vld [vmem:[#allocation3 + $0x18] sm:$0xff]
    %v115 = vld [vmem:[#allocation3 + $0x20] sm:$0xff]
    %v116 = vld [vmem:[#allocation3 + $0x28] sm:$0xff]
    %v117 = vld [vmem:[#allocation3 + $0x30] sm:$0xff]
    %v118 = vld [vmem:[#allocation3 + $0x38] sm:$0xff]
    %v119 = vld [vmem:[#allocation3 + $0x40] sm:$0xff]
    %v120 = vld [vmem:[#allocation3 + $0x48] sm:$0xff]
    %v121 = vld [vmem:[#allocation3 + $0x50] sm:$0xff]
    %v122 = vld [vmem:[#allocation3 + $0x58] sm:$0xff]
    %v123 = vld [vmem:[#allocation3 + $0x60] sm:$0xff]
    %v124 = vld [vmem:[#allocation3 + $0x68] sm:$0xff]
    %v125 = vld [vmem:[#allocation3 + $0x70] sm:$0xff]
    %v126 = vld [vmem:[#allocation3 + $0x78] sm:$0xff]
    %v127 = vld [vmem:[#allocation3 + $0x80] sm:$0xff]
    %v128 = vld [vmem:[#allocation3 + $0x88] sm:$0xff]
    %v129 = vld [vmem:[#allocation3 + $0x90] sm:$0xff]
    %v130 = vld [vmem:[#allocation3 + $0x98] sm:$0xff]
    %v131 = vld [vmem:[#allocation3 + $0xa0] sm:$0xff]
    %v132 = vld [vmem:[#allocation3 + $0xa8] sm:$0xff]
    %v133 = vld [vmem:[#allocation3 + $0xb0] sm:$0xff]
    %v134 = vld [vmem:[#allocation3 + $0xb8] sm:$0xff]
    %v135 = vld [vmem:[#allocation3 + $0xc0] sm:$0xff]
    %v136 = vld [vmem:[#allocation3 + $0xc8] sm:$0xff]
    %v137 = vld [vmem:[#allocation3 + $0xd0] sm:$0xff]
    %v138 = vld [vmem:[#allocation3 + $0xd8] sm:$0xff]
    %v139 = vld [vmem:[#allocation3 + $0xe0] sm:$0xff]
    %v140 = vld [vmem:[#allocation3 + $0xe8] sm:$0xff]
    %v141 = vld [vmem:[#allocation3 + $0xf0] sm:$0xff]
    %v142 = vld [vmem:[#allocation3 + $0xf8] sm:$0xff]
    %v143 = vsub.f32 %v79, %v111
    %v144 = vsub.f32 %v80, %v112
    %v145 = vsub.f32 %v81, %v113
    %v146 = vsub.f32 %v82, %v114
    %v147 = vsub.f32 %v83, %v115
    %v148 = vsub.f32 %v84, %v116
    %v149 = vsub.f32 %v85, %v117
    %v150 = vsub.f32 %v86, %v118
    %v151 = vsub.f32 %v87, %v119
    %v152 = vsub.f32 %v88, %v120
    %v153 = vsub.f32 %v89, %v121
    %v154 = vsub.f32 %v90, %v122
    %v155 = vsub.f32 %v91, %v123
    %v156 = vsub.f32 %v92, %v124
    %v157 = vsub.f32 %v93, %v125
    %v158 = vsub.f32 %v94, %v126
    %v159 = vsub.f32 %v95, %v127
    %v160 = vsub.f32 %v96, %v128
    %v161 = vsub.f32 %v97, %v129
    %v162 = vsub.f32 %v98, %v130
    %v163 = vsub.f32 %v99, %v131
    %v164 = vsub.f32 %v100, %v132
    %v165 = vsub.f32 %v101, %v133
    %v166 = vsub.f32 %v102, %v134
    %v167 = vsub.f32 %v103, %v135
    %v168 = vsub.f32 %v104, %v136
    %v169 = vsub.f32 %v105, %v137
    %v170 = vsub.f32 %v106, %v138
    %v171 = vsub.f32 %v107, %v139
    %v172 = vsub.f32 %v108, %v140
    %v173 = vsub.f32 %v109, %v141
    %v174 = vsub.f32 %v110, %v142
    %v175 = vld [vmem:[#allocation2] sm:$0xff]
    %v176 = vld [vmem:[#allocation2 + $0x8] sm:$0xff]
    %v177 = vld [vmem:[#allocation2 + $0x10] sm:$0xff]
    %v178 = vld [vmem:[#allocation2 + $0x18] sm:$0xff]
    %v179 = vld [vmem:[#allocation2 + $0x20] sm:$0xff]
    %v180 = vld [vmem:[#allocation2 + $0x28] sm:$0xff]
    %v181 = vld [vmem:[#allocation2 + $0x30] sm:$0xff]
    %v182 = vld [vmem:[#allocation2 + $0x38] sm:$0xff]
    %v183 = vld [vmem:[#allocation2 + $0x40] sm:$0xff]
    %v184 = vld [vmem:[#allocation2 + $0x48] sm:$0xff]
    %v185 = vld [vmem:[#allocation2 + $0x50] sm:$0xff]
    %v186 = vld [vmem:[#allocation2 + $0x58] sm:$0xff]
    %v187 = vld [vmem:[#allocation2 + $0x60] sm:$0xff]
    %v188 = vld [vmem:[#allocation2 + $0x68] sm:$0xff]
    %v189 = vld [vmem:[#allocation2 + $0x70] sm:$0xff]
    %v190 = vld [vmem:[#allocation2 + $0x78] sm:$0xff]
    %v191 = vld [vmem:[#allocation2 + $0x80] sm:$0xff]
    %v192 = vld [vmem:[#allocation2 + $0x88] sm:$0xff]
    %v193 = vld [vmem:[#allocation2 + $0x90] sm:$0xff]
    %v194 = vld [vmem:[#allocation2 + $0x98] sm:$0xff]
    %v195 = vld [vmem:[#allocation2 + $0xa0] sm:$0xff]
    %v196 = vld [vmem:[#allocation2 + $0xa8] sm:$0xff]
    %v197 = vld [vmem:[#allocation2 + $0xb0] sm:$0xff]
    %v198 = vld [vmem:[#allocation2 + $0xb8] sm:$0xff]
    %v199 = vld [vmem:[#allocation2 + $0xc0] sm:$0xff]
    %v200 = vld [vmem:[#allocation2 + $0xc8] sm:$0xff]
    %v201 = vld [vmem:[#allocation2 + $0xd0] sm:$0xff]
    %v202 = vld [vmem:[#allocation2 + $0xd8] sm:$0xff]
    %v203 = vld [vmem:[#allocation2 + $0xe0] sm:$0xff]
    %v204 = vld [vmem:[#allocation2 + $0xe8] sm:$0xff]
    %v205 = vld [vmem:[#allocation2 + $0xf0] sm:$0xff]
    %v206 = vld [vmem:[#allocation2 + $0xf8] sm:$0xff]
    %v207 = vmul.f32 %v143, %v143
    %v208 = vmul.f32 %v144, %v144
    %v209 = vmul.f32 %v145, %v145
    %v210 = vmul.f32 %v146, %v146
    %v211 = vmul.f32 %v147, %v147
    %v212 = vmul.f32 %v148, %v148
    %v213 = vmul.f32 %v149, %v149
    %v214 = vmul.f32 %v150, %v150
    %v215 = vmul.f32 %v151, %v151
    %v216 = vmul.f32 %v152, %v152
    %v217 = vmul.f32 %v153, %v153
    %v218 = vmul.f32 %v154, %v154
    %v219 = vmul.f32 %v155, %v155
    %v220 = vmul.f32 %v156, %v156
    %v221 = vmul.f32 %v157, %v157
    %v222 = vmul.f32 %v158, %v158
    %v223 = vmul.f32 %v159, %v159
    %v224 = vmul.f32 %v160, %v160
    %v225 = vmul.f32 %v161, %v161
    %v226 = vmul.f32 %v162, %v162
    %v227 = vmul.f32 %v163, %v163
    %v228 = vmul.f32 %v164, %v164
    %v229 = vmul.f32 %v165, %v165
    %v230 = vmul.f32 %v166, %v166
    %v231 = vmul.f32 %v167, %v167
    %v232 = vmul.f32 %v168, %v168
    %v233 = vmul.f32 %v169, %v169
    %v234 = vmul.f32 %v170, %v170
    %v235 = vmul.f32 %v171, %v171
    %v236 = vmul.f32 %v172, %v172
    %v237 = vmul.f32 %v173, %v173
    %v238 = vmul.f32 %v174, %v174
    %239 = vmatpush.msra.mxu0 1.0
    %240 = vmatpush.msra.mxu0 1.0
    %241 = vmatpush.msra.mxu0 1.0
    %242 = vmatpush.msra.mxu0 1.0
    %243 = vmatpush.msra.mxu0 1.0
    %244 = vmatpush.msra.mxu0 1.0
    %245 = vmatpush.msra.mxu0 1.0
    %246 = vmatpush.msra.mxu0 1.0
    %247 = vmatpush.msra.mxu0 1.0
    %248 = vmatpush.msra.mxu0 1.0
    %249 = vmatpush.msra.mxu0 1.0
    %250 = vmatpush.msra.mxu0 1.0
    %251 = vmatpush.msra.mxu0 1.0
    %252 = vmatpush.msra.mxu0 1.0
    %253 = vmatpush.msra.mxu0 1.0
    %254 = vmatpush.msra.mxu0 1.0
    %v255 = vand.u32 %v207, 4294901760
    %v256 = vsub.f32 %v207, %v255
    %v257 = vand.u32 %v256, 4294901760
    %v258 = vsub.f32 %v256, %v257
    %v259 = vand.u32 %v258, 4294901760
    %260 = vmatmul.f32.gmra.mxu0 %v259
    %v261 = vpop.f32.mrf.mxu0
    %v262 = vadd.f32 0.0, %v261
    %v263 = vand.u32 %v208, 4294901760
    %v264 = vsub.f32 %v208, %v263
    %v265 = vand.u32 %v264, 4294901760
    %v266 = vsub.f32 %v264, %v265
    %v267 = vand.u32 %v266, 4294901760
    %268 = vmatmul.f32.gmra.mxu0 %v267
    %v269 = vpop.f32.mrf.mxu0
    %v270 = vadd.f32 0.0, %v269
    %v271 = vand.u32 %v209, 4294901760
    %v272 = vsub.f32 %v209, %v271
    %v273 = vand.u32 %v272, 4294901760
    %v274 = vsub.f32 %v272, %v273
    %v275 = vand.u32 %v274, 4294901760
    %276 = vmatmul.f32.gmra.mxu0 %v275
    %v277 = vpop.f32.mrf.mxu0
    %v278 = vadd.f32 0.0, %v277
    %v279 = vand.u32 %v210, 4294901760
    %v280 = vsub.f32 %v210, %v279
    %v281 = vand.u32 %v280, 4294901760
    %v282 = vsub.f32 %v280, %v281
    %v283 = vand.u32 %v282, 4294901760
    %284 = vmatmul.f32.gmra.mxu0 %v283
    %v285 = vpop.f32.mrf.mxu0
    %v286 = vadd.f32 0.0, %v285
    %v287 = vand.u32 %v211, 4294901760
    %v288 = vsub.f32 %v211, %v287
    %v289 = vand.u32 %v288, 4294901760
    %v290 = vsub.f32 %v288, %v289
    %v291 = vand.u32 %v290, 4294901760
    %292 = vmatmul.f32.gmra.mxu0 %v291
    %v293 = vpop.f32.mrf.mxu0
    %v294 = vadd.f32 0.0, %v293
    %v295 = vand.u32 %v212, 4294901760
    %v296 = vsub.f32 %v212, %v295
    %v297 = vand.u32 %v296, 4294901760
    %v298 = vsub.f32 %v296, %v297
    %v299 = vand.u32 %v298, 4294901760
    %300 = vmatmul.f32.gmra.mxu0 %v299
    %v301 = vpop.f32.mrf.mxu0
    %v302 = vadd.f32 0.0, %v301
    %v303 = vand.u32 %v213, 4294901760
    %v304 = vsub.f32 %v213, %v303
    %v305 = vand.u32 %v304, 4294901760
    %v306 = vsub.f32 %v304, %v305
    %v307 = vand.u32 %v306, 4294901760
    %308 = vmatmul.f32.gmra.mxu0 %v307
    %v309 = vpop.f32.mrf.mxu0
    %v310 = vadd.f32 0.0, %v309
    %v311 = vand.u32 %v214, 4294901760
    %v312 = vsub.f32 %v214, %v311
    %v313 = vand.u32 %v312, 4294901760
    %v314 = vsub.f32 %v312, %v313
    %v315 = vand.u32 %v314, 4294901760
    %316 = vmatmul.f32.gmra.mxu0 %v315
    %v317 = vpop.f32.mrf.mxu0
    %v318 = vadd.f32 0.0, %v317
    %v319 = vand.u32 %v215, 4294901760
    %v320 = vsub.f32 %v215, %v319
    %v321 = vand.u32 %v320, 4294901760
    %v322 = vsub.f32 %v320, %v321
    %v323 = vand.u32 %v322, 4294901760
    %324 = vmatmul.f32.gmra.mxu0 %v323
    %v325 = vpop.f32.mrf.mxu0
    %v326 = vadd.f32 0.0, %v325
    %v327 = vand.u32 %v216, 4294901760
    %v328 = vsub.f32 %v216, %v327
    %v329 = vand.u32 %v328, 4294901760
    %v330 = vsub.f32 %v328, %v329
    %v331 = vand.u32 %v330, 4294901760
    %332 = vmatmul.f32.gmra.mxu0 %v331
    %v333 = vpop.f32.mrf.mxu0
    %v334 = vadd.f32 0.0, %v333
    %v335 = vand.u32 %v217, 4294901760
    %v336 = vsub.f32 %v217, %v335
    %v337 = vand.u32 %v336, 4294901760
    %v338 = vsub.f32 %v336, %v337
    %v339 = vand.u32 %v338, 4294901760
    %340 = vmatmul.f32.gmra.mxu0 %v339
    %v341 = vpop.f32.mrf.mxu0
    %v342 = vadd.f32 0.0, %v341
    %v343 = vand.u32 %v218, 4294901760
    %v344 = vsub.f32 %v218, %v343
    %v345 = vand.u32 %v344, 4294901760
    %v346 = vsub.f32 %v344, %v345
    %v347 = vand.u32 %v346, 4294901760
    %348 = vmatmul.f32.gmra.mxu0 %v347
    %v349 = vpop.f32.mrf.mxu0
    %v350 = vadd.f32 0.0, %v349
    %v351 = vand.u32 %v219, 4294901760
    %v352 = vsub.f32 %v219, %v351
    %v353 = vand.u32 %v352, 4294901760
    %v354 = vsub.f32 %v352, %v353
    %v355 = vand.u32 %v354, 4294901760
    %356 = vmatmul.f32.gmra.mxu0 %v355
    %v357 = vpop.f32.mrf.mxu0
    %v358 = vadd.f32 0.0, %v357
    %v359 = vand.u32 %v220, 4294901760
    %v360 = vsub.f32 %v220, %v359
    %v361 = vand.u32 %v360, 4294901760
    %v362 = vsub.f32 %v360, %v361
    %v363 = vand.u32 %v362, 4294901760
    %364 = vmatmul.f32.gmra.mxu0 %v363
    %v365 = vpop.f32.mrf.mxu0
    %v366 = vadd.f32 0.0, %v365
    %v367 = vand.u32 %v221, 4294901760
    %v368 = vsub.f32 %v221, %v367
    %v369 = vand.u32 %v368, 4294901760
    %v370 = vsub.f32 %v368, %v369
    %v371 = vand.u32 %v370, 4294901760
    %372 = vmatmul.f32.gmra.mxu0 %v371
    %v373 = vpop.f32.mrf.mxu0
    %v374 = vadd.f32 0.0, %v373
    %v375 = vand.u32 %v222, 4294901760
    %v376 = vsub.f32 %v222, %v375
    %v377 = vand.u32 %v376, 4294901760
    %v378 = vsub.f32 %v376, %v377
    %v379 = vand.u32 %v378, 4294901760
    %380 = vmatmul.f32.gmra.mxu0 %v379
    %v381 = vpop.f32.mrf.mxu0
    %v382 = vadd.f32 0.0, %v381
    %v383 = vand.u32 %v223, 4294901760
    %v384 = vsub.f32 %v223, %v383
    %v385 = vand.u32 %v384, 4294901760
    %v386 = vsub.f32 %v384, %v385
    %v387 = vand.u32 %v386, 4294901760
    %388 = vmatmul.f32.gmra.mxu0 %v387
    %v389 = vpop.f32.mrf.mxu0
    %v390 = vadd.f32 0.0, %v389
    %v391 = vand.u32 %v224, 4294901760
    %v392 = vsub.f32 %v224, %v391
    %v393 = vand.u32 %v392, 4294901760
    %v394 = vsub.f32 %v392, %v393
    %v395 = vand.u32 %v394, 4294901760
    %396 = vmatmul.f32.gmra.mxu0 %v395
    %v397 = vpop.f32.mrf.mxu0
    %v398 = vadd.f32 0.0, %v397
    %v399 = vand.u32 %v225, 4294901760
    %v400 = vsub.f32 %v225, %v399
    %v401 = vand.u32 %v400, 4294901760
    %v402 = vsub.f32 %v400, %v401
    %v403 = vand.u32 %v402, 4294901760
    %404 = vmatmul.f32.gmra.mxu0 %v403
    %v405 = vpop.f32.mrf.mxu0
    %v406 = vadd.f32 0.0, %v405
    %v407 = vand.u32 %v226, 4294901760
    %v408 = vsub.f32 %v226, %v407
    %v409 = vand.u32 %v408, 4294901760
    %v410 = vsub.f32 %v408, %v409
    %v411 = vand.u32 %v410, 4294901760
    %412 = vmatmul.f32.gmra.mxu0 %v411
    %v413 = vpop.f32.mrf.mxu0
    %v414 = vadd.f32 0.0, %v413
    %v415 = vand.u32 %v227, 4294901760
    %v416 = vsub.f32 %v227, %v415
    %v417 = vand.u32 %v416, 4294901760
    %v418 = vsub.f32 %v416, %v417
    %v419 = vand.u32 %v418, 4294901760
    %420 = vmatmul.f32.gmra.mxu0 %v419
    %v421 = vpop.f32.mrf.mxu0
    %v422 = vadd.f32 0.0, %v421
    %v423 = vand.u32 %v228, 4294901760
    %v424 = vsub.f32 %v228, %v423
    %v425 = vand.u32 %v424, 4294901760
    %v426 = vsub.f32 %v424, %v425
    %v427 = vand.u32 %v426, 4294901760
    %428 = vmatmul.f32.gmra.mxu0 %v427
    %v429 = vpop.f32.mrf.mxu0
    %v430 = vadd.f32 0.0, %v429
    %v431 = vand.u32 %v229, 4294901760
    %v432 = vsub.f32 %v229, %v431
    %v433 = vand.u32 %v432, 4294901760
    %v434 = vsub.f32 %v432, %v433
    %v435 = vand.u32 %v434, 4294901760
    %436 = vmatmul.f32.gmra.mxu0 %v435
    %v437 = vpop.f32.mrf.mxu0
    %v438 = vadd.f32 0.0, %v437
    %v439 = vand.u32 %v230, 4294901760
    %v440 = vsub.f32 %v230, %v439
    %v441 = vand.u32 %v440, 4294901760
    %v442 = vsub.f32 %v440, %v441
    %v443 = vand.u32 %v442, 4294901760
    %444 = vmatmul.f32.gmra.mxu0 %v443
    %v445 = vpop.f32.mrf.mxu0
    %v446 = vadd.f32 0.0, %v445
    %v447 = vand.u32 %v231, 4294901760
    %v448 = vsub.f32 %v231, %v447
    %v449 = vand.u32 %v448, 4294901760
    %v450 = vsub.f32 %v448, %v449
    %v451 = vand.u32 %v450, 4294901760
    %452 = vmatmul.f32.gmra.mxu0 %v451
    %v453 = vpop.f32.mrf.mxu0
    %v454 = vadd.f32 0.0, %v453
    %v455 = vand.u32 %v232, 4294901760
    %v456 = vsub.f32 %v232, %v455
    %v457 = vand.u32 %v456, 4294901760
    %v458 = vsub.f32 %v456, %v457
    %v459 = vand.u32 %v458, 4294901760
    %460 = vmatmul.f32.gmra.mxu0 %v459
    %v461 = vpop.f32.mrf.mxu0
    %v462 = vadd.f32 0.0, %v461
    %v463 = vand.u32 %v233, 4294901760
    %v464 = vsub.f32 %v233, %v463
    %v465 = vand.u32 %v464, 4294901760
    %v466 = vsub.f32 %v464, %v465
    %v467 = vand.u32 %v466, 4294901760
    %468 = vmatmul.f32.gmra.mxu0 %v467
    %v469 = vpop.f32.mrf.mxu0
    %v470 = vadd.f32 0.0, %v469
    %v471 = vand.u32 %v234, 4294901760
    %v472 = vsub.f32 %v234, %v471
    %v473 = vand.u32 %v472, 4294901760
    %v474 = vsub.f32 %v472, %v473
    %v475 = vand.u32 %v474, 4294901760
    %476 = vmatmul.f32.gmra.mxu0 %v475
    %v477 = vpop.f32.mrf.mxu0
    %v478 = vadd.f32 0.0, %v477
    %v479 = vand.u32 %v235, 4294901760
    %v480 = vsub.f32 %v235, %v479
    %v481 = vand.u32 %v480, 4294901760
    %v482 = vsub.f32 %v480, %v481
    %v483 = vand.u32 %v482, 4294901760
    %484 = vmatmul.f32.gmra.mxu0 %v483
    %v485 = vpop.f32.mrf.mxu0
    %v486 = vadd.f32 0.0, %v485
    %v487 = vand.u32 %v236, 4294901760
    %v488 = vsub.f32 %v236, %v487
    %v489 = vand.u32 %v488, 4294901760
    %v490 = vsub.f32 %v488, %v489
    %v491 = vand.u32 %v490, 4294901760
    %492 = vmatmul.f32.gmra.mxu0 %v491
    %v493 = vpop.f32.mrf.mxu0
    %v494 = vadd.f32 0.0, %v493
    %v495 = vand.u32 %v237, 4294901760
    %v496 = vsub.f32 %v237, %v495
    %v497 = vand.u32 %v496, 4294901760
    %v498 = vsub.f32 %v496, %v497
    %v499 = vand.u32 %v498, 4294901760
    %500 = vmatmul.f32.gmra.mxu0 %v499
    %v501 = vpop.f32.mrf.mxu0
    %v502 = vadd.f32 0.0, %v501
    %v503 = vand.u32 %v238, 4294901760
    %v504 = vsub.f32 %v238, %v503
    %v505 = vand.u32 %v504, 4294901760
    %v506 = vsub.f32 %v504, %v505
    %v507 = vand.u32 %v506, 4294901760
    %508 = vmatmul.f32.gmra.mxu0 %v507
    %v509 = vpop.f32.mrf.mxu0
    %v510 = vadd.f32 0.0, %v509
    %511 = vdwg.mxu0
    %512 = vmatpush.msra.mxu0 0.0
    %513 = vmatpush.msra.mxu0 0.0
    %514 = vmatpush.msra.mxu0 0.0
    %515 = vmatpush.msra.mxu0 0.0
    %516 = vmatpush.msra.mxu0 0.0
    %517 = vmatpush.msra.mxu0 0.0
    %518 = vmatpush.msra.mxu0 0.0
    %519 = vmatpush.msra.mxu0 0.0
    %520 = vmatpush.msra.mxu0 0.0
    %521 = vmatpush.msra.mxu0 0.0
    %522 = vmatpush.msra.mxu0 0.0
    %523 = vmatpush.msra.mxu0 0.0
    %524 = vmatpush.msra.mxu0 0.0
    %525 = vmatpush.msra.mxu0 0.0
    %526 = vmatpush.msra.mxu0 0.0
    %527 = vmatpush.msra.mxu0 0.0
    %v528 = vand.u32 %v207, 4294901760
    %529 = vmatmul.f32.gmra.mxu0 %v528
    %v530 = vpop.f32.mrf.mxu0
    %v531 = vadd.f32 %v262, %v530
    %v532 = vand.u32 %v208, 4294901760
    %533 = vmatmul.f32.gmra.mxu0 %v532
    %v534 = vpop.f32.mrf.mxu0
    %v535 = vadd.f32 %v270, %v534
    %v536 = vand.u32 %v209, 4294901760
    %537 = vmatmul.f32.gmra.mxu0 %v536
    %v538 = vpop.f32.mrf.mxu0
    %v539 = vadd.f32 %v278, %v538
    %v540 = vand.u32 %v210, 4294901760
    %541 = vmatmul.f32.gmra.mxu0 %v540
    %v542 = vpop.f32.mrf.mxu0
    %v543 = vadd.f32 %v286, %v542
    %v544 = vand.u32 %v211, 4294901760
    %545 = vmatmul.f32.gmra.mxu0 %v544
    %v546 = vpop.f32.mrf.mxu0
    %v547 = vadd.f32 %v294, %v546
    %v548 = vand.u32 %v212, 4294901760
    %549 = vmatmul.f32.gmra.mxu0 %v548
    %v550 = vpop.f32.mrf.mxu0
    %v551 = vadd.f32 %v302, %v550
    %v552 = vand.u32 %v213, 4294901760
    %553 = vmatmul.f32.gmra.mxu0 %v552
    %v554 = vpop.f32.mrf.mxu0
    %v555 = vadd.f32 %v310, %v554
    %v556 = vand.u32 %v214, 4294901760
    %557 = vmatmul.f32.gmra.mxu0 %v556
    %v558 = vpop.f32.mrf.mxu0
    %v559 = vadd.f32 %v318, %v558
    %v560 = vand.u32 %v215, 4294901760
    %561 = vmatmul.f32.gmra.mxu0 %v560
    %v562 = vpop.f32.mrf.mxu0
    %v563 = vadd.f32 %v326, %v562
    %v564 = vand.u32 %v216, 4294901760
    %565 = vmatmul.f32.gmra.mxu0 %v564
    %v566 = vpop.f32.mrf.mxu0
    %v567 = vadd.f32 %v334, %v566
    %v568 = vand.u32 %v217, 4294901760
    %569 = vmatmul.f32.gmra.mxu0 %v568
    %v570 = vpop.f32.mrf.mxu0
    %v571 = vadd.f32 %v342, %v570
    %v572 = vand.u32 %v218, 4294901760
    %573 = vmatmul.f32.gmra.mxu0 %v572
    %v574 = vpop.f32.mrf.mxu0
    %v575 = vadd.f32 %v350, %v574
    %v576 = vand.u32 %v219, 4294901760
    %577 = vmatmul.f32.gmra.mxu0 %v576
    %v578 = vpop.f32.mrf.mxu0
    %v579 = vadd.f32 %v358, %v578
    %v580 = vand.u32 %v220, 4294901760
    %581 = vmatmul.f32.gmra.mxu0 %v580
    %v582 = vpop.f32.mrf.mxu0
    %v583 = vadd.f32 %v366, %v582
    %v584 = vand.u32 %v221, 4294901760
    %585 = vmatmul.f32.gmra.mxu0 %v584
    %v586 = vpop.f32.mrf.mxu0
    %v587 = vadd.f32 %v374, %v586
    %v588 = vand.u32 %v222, 4294901760
    %589 = vmatmul.f32.gmra.mxu0 %v588
    %v590 = vpop.f32.mrf.mxu0
    %v591 = vadd.f32 %v382, %v590
    %v592 = vand.u32 %v223, 4294901760
    %593 = vmatmul.f32.gmra.mxu0 %v592
    %v594 = vpop.f32.mrf.mxu0
    %v595 = vadd.f32 %v390, %v594
    %v596 = vand.u32 %v224, 4294901760
    %597 = vmatmul.f32.gmra.mxu0 %v596
    %v598 = vpop.f32.mrf.mxu0
    %v599 = vadd.f32 %v398, %v598
    %v600 = vand.u32 %v225, 4294901760
    %601 = vmatmul.f32.gmra.mxu0 %v600
    %v602 = vpop.f32.mrf.mxu0
    %v603 = vadd.f32 %v406, %v602
    %v604 = vand.u32 %v226, 4294901760
    %605 = vmatmul.f32.gmra.mxu0 %v604
    %v606 = vpop.f32.mrf.mxu0
    %v607 = vadd.f32 %v414, %v606
    %v608 = vand.u32 %v227, 4294901760
    %609 = vmatmul.f32.gmra.mxu0 %v608
    %v610 = vpop.f32.mrf.mxu0
    %v611 = vadd.f32 %v422, %v610
    %v612 = vand.u32 %v228, 4294901760
    %613 = vmatmul.f32.gmra.mxu0 %v612
    %v614 = vpop.f32.mrf.mxu0
    %v615 = vadd.f32 %v430, %v614
    %v616 = vand.u32 %v229, 4294901760
    %617 = vmatmul.f32.gmra.mxu0 %v616
    %v618 = vpop.f32.mrf.mxu0
    %v619 = vadd.f32 %v438, %v618
    %v620 = vand.u32 %v230, 4294901760
    %621 = vmatmul.f32.gmra.mxu0 %v620
    %v622 = vpop.f32.mrf.mxu0
    %v623 = vadd.f32 %v446, %v622
    %v624 = vand.u32 %v231, 4294901760
    %625 = vmatmul.f32.gmra.mxu0 %v624
    %v626 = vpop.f32.mrf.mxu0
    %v627 = vadd.f32 %v454, %v626
    %v628 = vand.u32 %v232, 4294901760
    %629 = vmatmul.f32.gmra.mxu0 %v628
    %v630 = vpop.f32.mrf.mxu0
    %v631 = vadd.f32 %v462, %v630
    %v632 = vand.u32 %v233, 4294901760
    %633 = vmatmul.f32.gmra.mxu0 %v632
    %v634 = vpop.f32.mrf.mxu0
    %v635 = vadd.f32 %v470, %v634
    %v636 = vand.u32 %v234, 4294901760
    %637 = vmatmul.f32.gmra.mxu0 %v636
    %v638 = vpop.f32.mrf.mxu0
    %v639 = vadd.f32 %v478, %v638
    %v640 = vand.u32 %v235, 4294901760
    %641 = vmatmul.f32.gmra.mxu0 %v640
    %v642 = vpop.f32.mrf.mxu0
    %v643 = vadd.f32 %v486, %v642
    %v644 = vand.u32 %v236, 4294901760
    %645 = vmatmul.f32.gmra.mxu0 %v644
    %v646 = vpop.f32.mrf.mxu0
    %v647 = vadd.f32 %v494, %v646
    %v648 = vand.u32 %v237, 4294901760
    %649 = vmatmul.f32.gmra.mxu0 %v648
    %v650 = vpop.f32.mrf.mxu0
    %v651 = vadd.f32 %v502, %v650
    %v652 = vand.u32 %v238, 4294901760
    %653 = vmatmul.f32.gmra.mxu0 %v652
    %v654 = vpop.f32.mrf.mxu0
    %v655 = vadd.f32 %v510, %v654
    %656 = vdwg.mxu0
    %657 = vmatpush.msra.mxu0 0.0
    %658 = vmatpush.msra.mxu0 0.0
    %659 = vmatpush.msra.mxu0 0.0
    %660 = vmatpush.msra.mxu0 0.0
    %661 = vmatpush.msra.mxu0 0.0
    %662 = vmatpush.msra.mxu0 0.0
    %663 = vmatpush.msra.mxu0 0.0
    %664 = vmatpush.msra.mxu0 0.0
    %665 = vmatpush.msra.mxu0 0.0
    %666 = vmatpush.msra.mxu0 0.0
    %667 = vmatpush.msra.mxu0 0.0
    %668 = vmatpush.msra.mxu0 0.0
    %669 = vmatpush.msra.mxu0 0.0
    %670 = vmatpush.msra.mxu0 0.0
    %671 = vmatpush.msra.mxu0 0.0
    %672 = vmatpush.msra.mxu0 0.0
    %v673 = vand.u32 %v207, 4294901760
    %v674 = vsub.f32 %v207, %v673
    %675 = vmatmul.f32.gmra.mxu0 %v674
    %v676 = vpop.f32.mrf.mxu0
    %v677 = vadd.f32 %v531, %v676
    %v678 = vand.u32 %v208, 4294901760
    %v679 = vsub.f32 %v208, %v678
    %680 = vmatmul.f32.gmra.mxu0 %v679
    %v681 = vpop.f32.mrf.mxu0
    %v682 = vadd.f32 %v535, %v681
    %v683 = vand.u32 %v209, 4294901760
    %v684 = vsub.f32 %v209, %v683
    %685 = vmatmul.f32.gmra.mxu0 %v684
    %v686 = vpop.f32.mrf.mxu0
    %v687 = vadd.f32 %v539, %v686
    %v688 = vand.u32 %v210, 4294901760
    %v689 = vsub.f32 %v210, %v688
    %690 = vmatmul.f32.gmra.mxu0 %v689
    %v691 = vpop.f32.mrf.mxu0
    %v692 = vadd.f32 %v543, %v691
    %v693 = vand.u32 %v211, 4294901760
    %v694 = vsub.f32 %v211, %v693
    %695 = vmatmul.f32.gmra.mxu0 %v694
    %v696 = vpop.f32.mrf.mxu0
    %v697 = vadd.f32 %v547, %v696
    %v698 = vand.u32 %v212, 4294901760
    %v699 = vsub.f32 %v212, %v698
    %700 = vmatmul.f32.gmra.mxu0 %v699
    %v701 = vpop.f32.mrf.mxu0
    %v702 = vadd.f32 %v551, %v701
    %v703 = vand.u32 %v213, 4294901760
    %v704 = vsub.f32 %v213, %v703
    %705 = vmatmul.f32.gmra.mxu0 %v704
    %v706 = vpop.f32.mrf.mxu0
    %v707 = vadd.f32 %v555, %v706
    %v708 = vand.u32 %v214, 4294901760
    %v709 = vsub.f32 %v214, %v708
    %710 = vmatmul.f32.gmra.mxu0 %v709
    %v711 = vpop.f32.mrf.mxu0
    %v712 = vadd.f32 %v559, %v711
    %v713 = vand.u32 %v215, 4294901760
    %v714 = vsub.f32 %v215, %v713
    %715 = vmatmul.f32.gmra.mxu0 %v714
    %v716 = vpop.f32.mrf.mxu0
    %v717 = vadd.f32 %v563, %v716
    %v718 = vand.u32 %v216, 4294901760
    %v719 = vsub.f32 %v216, %v718
    %720 = vmatmul.f32.gmra.mxu0 %v719
    %v721 = vpop.f32.mrf.mxu0
    %v722 = vadd.f32 %v567, %v721
    %v723 = vand.u32 %v217, 4294901760
    %v724 = vsub.f32 %v217, %v723
    %725 = vmatmul.f32.gmra.mxu0 %v724
    %v726 = vpop.f32.mrf.mxu0
    %v727 = vadd.f32 %v571, %v726
    %v728 = vand.u32 %v218, 4294901760
    %v729 = vsub.f32 %v218, %v728
    %730 = vmatmul.f32.gmra.mxu0 %v729
    %v731 = vpop.f32.mrf.mxu0
    %v732 = vadd.f32 %v575, %v731
    %v733 = vand.u32 %v219, 4294901760
    %v734 = vsub.f32 %v219, %v733
    %735 = vmatmul.f32.gmra.mxu0 %v734
    %v736 = vpop.f32.mrf.mxu0
    %v737 = vadd.f32 %v579, %v736
    %v738 = vand.u32 %v220, 4294901760
    %v739 = vsub.f32 %v220, %v738
    %740 = vmatmul.f32.gmra.mxu0 %v739
    %v741 = vpop.f32.mrf.mxu0
    %v742 = vadd.f32 %v583, %v741
    %v743 = vand.u32 %v221, 4294901760
    %v744 = vsub.f32 %v221, %v743
    %745 = vmatmul.f32.gmra.mxu0 %v744
    %v746 = vpop.f32.mrf.mxu0
    %v747 = vadd.f32 %v587, %v746
    %v748 = vand.u32 %v222, 4294901760
    %v749 = vsub.f32 %v222, %v748
    %750 = vmatmul.f32.gmra.mxu0 %v749
    %v751 = vpop.f32.mrf.mxu0
    %v752 = vadd.f32 %v591, %v751
    %v753 = vand.u32 %v223, 4294901760
    %v754 = vsub.f32 %v223, %v753
    %755 = vmatmul.f32.gmra.mxu0 %v754
    %v756 = vpop.f32.mrf.mxu0
    %v757 = vadd.f32 %v595, %v756
    %v758 = vand.u32 %v224, 4294901760
    %v759 = vsub.f32 %v224, %v758
    %760 = vmatmul.f32.gmra.mxu0 %v759
    %v761 = vpop.f32.mrf.mxu0
    %v762 = vadd.f32 %v599, %v761
    %v763 = vand.u32 %v225, 4294901760
    %v764 = vsub.f32 %v225, %v763
    %765 = vmatmul.f32.gmra.mxu0 %v764
    %v766 = vpop.f32.mrf.mxu0
    %v767 = vadd.f32 %v603, %v766
    %v768 = vand.u32 %v226, 4294901760
    %v769 = vsub.f32 %v226, %v768
    %770 = vmatmul.f32.gmra.mxu0 %v769
    %v771 = vpop.f32.mrf.mxu0
    %v772 = vadd.f32 %v607, %v771
    %v773 = vand.u32 %v227, 4294901760
    %v774 = vsub.f32 %v227, %v773
    %775 = vmatmul.f32.gmra.mxu0 %v774
    %v776 = vpop.f32.mrf.mxu0
    %v777 = vadd.f32 %v611, %v776
    %v778 = vand.u32 %v228, 4294901760
    %v779 = vsub.f32 %v228, %v778
    %780 = vmatmul.f32.gmra.mxu0 %v779
    %v781 = vpop.f32.mrf.mxu0
    %v782 = vadd.f32 %v615, %v781
    %v783 = vand.u32 %v229, 4294901760
    %v784 = vsub.f32 %v229, %v783
    %785 = vmatmul.f32.gmra.mxu0 %v784
    %v786 = vpop.f32.mrf.mxu0
    %v787 = vadd.f32 %v619, %v786
    %v788 = vand.u32 %v230, 4294901760
    %v789 = vsub.f32 %v230, %v788
    %790 = vmatmul.f32.gmra.mxu0 %v789
    %v791 = vpop.f32.mrf.mxu0
    %v792 = vadd.f32 %v623, %v791
    %v793 = vand.u32 %v231, 4294901760
    %v794 = vsub.f32 %v231, %v793
    %795 = vmatmul.f32.gmra.mxu0 %v794
    %v796 = vpop.f32.mrf.mxu0
    %v797 = vadd.f32 %v627, %v796
    %v798 = vand.u32 %v232, 4294901760
    %v799 = vsub.f32 %v232, %v798
    %800 = vmatmul.f32.gmra.mxu0 %v799
    %v801 = vpop.f32.mrf.mxu0
    %v802 = vadd.f32 %v631, %v801
    %v803 = vand.u32 %v233, 4294901760
    %v804 = vsub.f32 %v233, %v803
    %805 = vmatmul.f32.gmra.mxu0 %v804
    %v806 = vpop.f32.mrf.mxu0
    %v807 = vadd.f32 %v635, %v806
    %v808 = vand.u32 %v234, 4294901760
    %v809 = vsub.f32 %v234, %v808
    %810 = vmatmul.f32.gmra.mxu0 %v809
    %v811 = vpop.f32.mrf.mxu0
    %v812 = vadd.f32 %v639, %v811
    %v813 = vand.u32 %v235, 4294901760
    %v814 = vsub.f32 %v235, %v813
    %815 = vmatmul.f32.gmra.mxu0 %v814
    %v816 = vpop.f32.mrf.mxu0
    %v817 = vadd.f32 %v643, %v816
    %v818 = vand.u32 %v236, 4294901760
    %v819 = vsub.f32 %v236, %v818
    %820 = vmatmul.f32.gmra.mxu0 %v819
    %v821 = vpop.f32.mrf.mxu0
    %v822 = vadd.f32 %v647, %v821
    %v823 = vand.u32 %v237, 4294901760
    %v824 = vsub.f32 %v237, %v823
    %825 = vmatmul.f32.gmra.mxu0 %v824
    %v826 = vpop.f32.mrf.mxu0
    %v827 = vadd.f32 %v651, %v826
    %v828 = vand.u32 %v238, 4294901760
    %v829 = vsub.f32 %v238, %v828
    %830 = vmatmul.f32.gmra.mxu0 %v829
    %v831 = vpop.f32.mrf.mxu0
    %v832 = vadd.f32 %v655, %v831
    %833 = vdwg.mxu0
    %834 = vmatpush.msra.mxu0 1.0
    %835 = vmatpush.msra.mxu0 1.0
    %836 = vmatpush.msra.mxu0 1.0
    %837 = vmatpush.msra.mxu0 1.0
    %838 = vmatpush.msra.mxu0 1.0
    %839 = vmatpush.msra.mxu0 1.0
    %840 = vmatpush.msra.mxu0 1.0
    %841 = vmatpush.msra.mxu0 1.0
    %842 = vmatpush.msra.mxu0 1.0
    %843 = vmatpush.msra.mxu0 1.0
    %844 = vmatpush.msra.mxu0 1.0
    %845 = vmatpush.msra.mxu0 1.0
    %846 = vmatpush.msra.mxu0 1.0
    %847 = vmatpush.msra.mxu0 1.0
    %848 = vmatpush.msra.mxu0 1.0
    %849 = vmatpush.msra.mxu0 1.0
    %v850 = vand.u32 %v207, 4294901760
    %v851 = vsub.f32 %v207, %v850
    %v852 = vand.u32 %v851, 4294901760
    %853 = vmatmul.f32.gmra.mxu0 %v852
    %v854 = vpop.f32.mrf.mxu0
    %v855 = vadd.f32 %v677, %v854
    %v856 = vand.u32 %v208, 4294901760
    %v857 = vsub.f32 %v208, %v856
    %v858 = vand.u32 %v857, 4294901760
    %859 = vmatmul.f32.gmra.mxu0 %v858
    %v860 = vpop.f32.mrf.mxu0
    %v861 = vadd.f32 %v682, %v860
    %v862 = vand.u32 %v209, 4294901760
    %v863 = vsub.f32 %v209, %v862
    %v864 = vand.u32 %v863, 4294901760
    %865 = vmatmul.f32.gmra.mxu0 %v864
    %v866 = vpop.f32.mrf.mxu0
    %v867 = vadd.f32 %v687, %v866
    %v868 = vand.u32 %v210, 4294901760
    %v869 = vsub.f32 %v210, %v868
    %v870 = vand.u32 %v869, 4294901760
    %871 = vmatmul.f32.gmra.mxu0 %v870
    %v872 = vpop.f32.mrf.mxu0
    %v873 = vadd.f32 %v692, %v872
    %v874 = vand.u32 %v211, 4294901760
    %v875 = vsub.f32 %v211, %v874
    %v876 = vand.u32 %v875, 4294901760
    %877 = vmatmul.f32.gmra.mxu0 %v876
    %v878 = vpop.f32.mrf.mxu0
    %v879 = vadd.f32 %v697, %v878
    %v880 = vand.u32 %v212, 4294901760
    %v881 = vsub.f32 %v212, %v880
    %v882 = vand.u32 %v881, 4294901760
    %883 = vmatmul.f32.gmra.mxu0 %v882
    %v884 = vpop.f32.mrf.mxu0
    %v885 = vadd.f32 %v702, %v884
    %v886 = vand.u32 %v213, 4294901760
    %v887 = vsub.f32 %v213, %v886
    %v888 = vand.u32 %v887, 4294901760
    %889 = vmatmul.f32.gmra.mxu0 %v888
    %v890 = vpop.f32.mrf.mxu0
    %v891 = vadd.f32 %v707, %v890
    %v892 = vand.u32 %v214, 4294901760
    %v893 = vsub.f32 %v214, %v892
    %v894 = vand.u32 %v893, 4294901760
    %895 = vmatmul.f32.gmra.mxu0 %v894
    %v896 = vpop.f32.mrf.mxu0
    %v897 = vadd.f32 %v712, %v896
    %v898 = vand.u32 %v215, 4294901760
    %v899 = vsub.f32 %v215, %v898
    %v900 = vand.u32 %v899, 4294901760
    %901 = vmatmul.f32.gmra.mxu0 %v900
    %v902 = vpop.f32.mrf.mxu0
    %v903 = vadd.f32 %v717, %v902
    %v904 = vand.u32 %v216, 4294901760
    %v905 = vsub.f32 %v216, %v904
    %v906 = vand.u32 %v905, 4294901760
    %907 = vmatmul.f32.gmra.mxu0 %v906
    %v908 = vpop.f32.mrf.mxu0
    %v909 = vadd.f32 %v722, %v908
    %v910 = vand.u32 %v217, 4294901760
    %v911 = vsub.f32 %v217, %v910
    %v912 = vand.u32 %v911, 4294901760
    %913 = vmatmul.f32.gmra.mxu0 %v912
    %v914 = vpop.f32.mrf.mxu0
    %v915 = vadd.f32 %v727, %v914
    %v916 = vand.u32 %v218, 4294901760
    %v917 = vsub.f32 %v218, %v916
    %v918 = vand.u32 %v917, 4294901760
    %919 = vmatmul.f32.gmra.mxu0 %v918
    %v920 = vpop.f32.mrf.mxu0
    %v921 = vadd.f32 %v732, %v920
    %v922 = vand.u32 %v219, 4294901760
    %v923 = vsub.f32 %v219, %v922
    %v924 = vand.u32 %v923, 4294901760
    %925 = vmatmul.f32.gmra.mxu0 %v924
    %v926 = vpop.f32.mrf.mxu0
    %v927 = vadd.f32 %v737, %v926
    %v928 = vand.u32 %v220, 4294901760
    %v929 = vsub.f32 %v220, %v928
    %v930 = vand.u32 %v929, 4294901760
    %931 = vmatmul.f32.gmra.mxu0 %v930
    %v932 = vpop.f32.mrf.mxu0
    %v933 = vadd.f32 %v742, %v932
    %v934 = vand.u32 %v221, 4294901760
    %v935 = vsub.f32 %v221, %v934
    %v936 = vand.u32 %v935, 4294901760
    %937 = vmatmul.f32.gmra.mxu0 %v936
    %v938 = vpop.f32.mrf.mxu0
    %v939 = vadd.f32 %v747, %v938
    %v940 = vand.u32 %v222, 4294901760
    %v941 = vsub.f32 %v222, %v940
    %v942 = vand.u32 %v941, 4294901760
    %943 = vmatmul.f32.gmra.mxu0 %v942
    %v944 = vpop.f32.mrf.mxu0
    %v945 = vadd.f32 %v752, %v944
    %v946 = vand.u32 %v223, 4294901760
    %v947 = vsub.f32 %v223, %v946
    %v948 = vand.u32 %v947, 4294901760
    %949 = vmatmul.f32.gmra.mxu0 %v948
    %v950 = vpop.f32.mrf.mxu0
    %v951 = vadd.f32 %v757, %v950
    %v952 = vand.u32 %v224, 4294901760
    %v953 = vsub.f32 %v224, %v952
    %v954 = vand.u32 %v953, 4294901760
    %955 = vmatmul.f32.gmra.mxu0 %v954
    %v956 = vpop.f32.mrf.mxu0
    %v957 = vadd.f32 %v762, %v956
    %v958 = vand.u32 %v225, 4294901760
    %v959 = vsub.f32 %v225, %v958
    %v960 = vand.u32 %v959, 4294901760
    %961 = vmatmul.f32.gmra.mxu0 %v960
    %v962 = vpop.f32.mrf.mxu0
    %v963 = vadd.f32 %v767, %v962
    %v964 = vand.u32 %v226, 4294901760
    %v965 = vsub.f32 %v226, %v964
    %v966 = vand.u32 %v965, 4294901760
    %967 = vmatmul.f32.gmra.mxu0 %v966
    %v968 = vpop.f32.mrf.mxu0
    %v969 = vadd.f32 %v772, %v968
    %v970 = vand.u32 %v227, 4294901760
    %v971 = vsub.f32 %v227, %v970
    %v972 = vand.u32 %v971, 4294901760
    %973 = vmatmul.f32.gmra.mxu0 %v972
    %v974 = vpop.f32.mrf.mxu0
    %v975 = vadd.f32 %v777, %v974
    %v976 = vand.u32 %v228, 4294901760
    %v977 = vsub.f32 %v228, %v976
    %v978 = vand.u32 %v977, 4294901760
    %979 = vmatmul.f32.gmra.mxu0 %v978
    %v980 = vpop.f32.mrf.mxu0
    %v981 = vadd.f32 %v782, %v980
    %v982 = vand.u32 %v229, 4294901760
    %v983 = vsub.f32 %v229, %v982
    %v984 = vand.u32 %v983, 4294901760
    %985 = vmatmul.f32.gmra.mxu0 %v984
    %v986 = vpop.f32.mrf.mxu0
    %v987 = vadd.f32 %v787, %v986
    %v988 = vand.u32 %v230, 4294901760
    %v989 = vsub.f32 %v230, %v988
    %v990 = vand.u32 %v989, 4294901760
    %991 = vmatmul.f32.gmra.mxu0 %v990
    %v992 = vpop.f32.mrf.mxu0
    %v993 = vadd.f32 %v792, %v992
    %v994 = vand.u32 %v231, 4294901760
    %v995 = vsub.f32 %v231, %v994
    %v996 = vand.u32 %v995, 4294901760
    %997 = vmatmul.f32.gmra.mxu0 %v996
    %v998 = vpop.f32.mrf.mxu0
    %v999 = vadd.f32 %v797, %v998
    %v1000 = vand.u32 %v232, 4294901760
    %v1001 = vsub.f32 %v232, %v1000
    %v1002 = vand.u32 %v1001, 4294901760
    %1003 = vmatmul.f32.gmra.mxu0 %v1002
    %v1004 = vpop.f32.mrf.mxu0
    %v1005 = vadd.f32 %v802, %v1004
    %v1006 = vand.u32 %v233, 4294901760
    %v1007 = vsub.f32 %v233, %v1006
    %v1008 = vand.u32 %v1007, 4294901760
    %1009 = vmatmul.f32.gmra.mxu0 %v1008
    %v1010 = vpop.f32.mrf.mxu0
    %v1011 = vadd.f32 %v807, %v1010
    %v1012 = vand.u32 %v234, 4294901760
    %v1013 = vsub.f32 %v234, %v1012
    %v1014 = vand.u32 %v1013, 4294901760
    %1015 = vmatmul.f32.gmra.mxu0 %v1014
    %v1016 = vpop.f32.mrf.mxu0
    %v1017 = vadd.f32 %v812, %v1016
    %v1018 = vand.u32 %v235, 4294901760
    %v1019 = vsub.f32 %v235, %v1018
    %v1020 = vand.u32 %v1019, 4294901760
    %1021 = vmatmul.f32.gmra.mxu0 %v1020
    %v1022 = vpop.f32.mrf.mxu0
    %v1023 = vadd.f32 %v817, %v1022
    %v1024 = vand.u32 %v236, 4294901760
    %v1025 = vsub.f32 %v236, %v1024
    %v1026 = vand.u32 %v1025, 4294901760
    %1027 = vmatmul.f32.gmra.mxu0 %v1026
    %v1028 = vpop.f32.mrf.mxu0
    %v1029 = vadd.f32 %v822, %v1028
    %v1030 = vand.u32 %v237, 4294901760
    %v1031 = vsub.f32 %v237, %v1030
    %v1032 = vand.u32 %v1031, 4294901760
    %1033 = vmatmul.f32.gmra.mxu0 %v1032
    %v1034 = vpop.f32.mrf.mxu0
    %v1035 = vadd.f32 %v827, %v1034
    %v1036 = vand.u32 %v238, 4294901760
    %v1037 = vsub.f32 %v238, %v1036
    %v1038 = vand.u32 %v1037, 4294901760
    %1039 = vmatmul.f32.gmra.mxu0 %v1038
    %v1040 = vpop.f32.mrf.mxu0
    %v1041 = vadd.f32 %v832, %v1040
    %1042 = vdwg.mxu0
    %1043 = vmatpush.msra.mxu0 0.0
    %1044 = vmatpush.msra.mxu0 0.0
    %1045 = vmatpush.msra.mxu0 0.0
    %1046 = vmatpush.msra.mxu0 0.0
    %1047 = vmatpush.msra.mxu0 0.0
    %1048 = vmatpush.msra.mxu0 0.0
    %1049 = vmatpush.msra.mxu0 0.0
    %1050 = vmatpush.msra.mxu0 0.0
    %1051 = vmatpush.msra.mxu0 0.0
    %1052 = vmatpush.msra.mxu0 0.0
    %1053 = vmatpush.msra.mxu0 0.0
    %1054 = vmatpush.msra.mxu0 0.0
    %1055 = vmatpush.msra.mxu0 0.0
    %1056 = vmatpush.msra.mxu0 0.0
    %1057 = vmatpush.msra.mxu0 0.0
    %1058 = vmatpush.msra.mxu0 0.0
    %v1059 = vand.u32 %v207, 4294901760
    %1060 = vmatmul.f32.gmra.mxu0 %v1059
    %v1061 = vpop.f32.mrf.mxu0
    %v1062 = vadd.f32 %v855, %v1061
    %v1063 = vand.u32 %v208, 4294901760
    %1064 = vmatmul.f32.gmra.mxu0 %v1063
    %v1065 = vpop.f32.mrf.mxu0
    %v1066 = vadd.f32 %v861, %v1065
    %v1067 = vand.u32 %v209, 4294901760
    %1068 = vmatmul.f32.gmra.mxu0 %v1067
    %v1069 = vpop.f32.mrf.mxu0
    %v1070 = vadd.f32 %v867, %v1069
    %v1071 = vand.u32 %v210, 4294901760
    %1072 = vmatmul.f32.gmra.mxu0 %v1071
    %v1073 = vpop.f32.mrf.mxu0
    %v1074 = vadd.f32 %v873, %v1073
    %v1075 = vand.u32 %v211, 4294901760
    %1076 = vmatmul.f32.gmra.mxu0 %v1075
    %v1077 = vpop.f32.mrf.mxu0
    %v1078 = vadd.f32 %v879, %v1077
    %v1079 = vand.u32 %v212, 4294901760
    %1080 = vmatmul.f32.gmra.mxu0 %v1079
    %v1081 = vpop.f32.mrf.mxu0
    %v1082 = vadd.f32 %v885, %v1081
    %v1083 = vand.u32 %v213, 4294901760
    %1084 = vmatmul.f32.gmra.mxu0 %v1083
    %v1085 = vpop.f32.mrf.mxu0
    %v1086 = vadd.f32 %v891, %v1085
    %v1087 = vand.u32 %v214, 4294901760
    %1088 = vmatmul.f32.gmra.mxu0 %v1087
    %v1089 = vpop.f32.mrf.mxu0
    %v1090 = vadd.f32 %v897, %v1089
    %v1091 = vand.u32 %v215, 4294901760
    %1092 = vmatmul.f32.gmra.mxu0 %v1091
    %v1093 = vpop.f32.mrf.mxu0
    %v1094 = vadd.f32 %v903, %v1093
    %v1095 = vand.u32 %v216, 4294901760
    %1096 = vmatmul.f32.gmra.mxu0 %v1095
    %v1097 = vpop.f32.mrf.mxu0
    %v1098 = vadd.f32 %v909, %v1097
    %v1099 = vand.u32 %v217, 4294901760
    %1100 = vmatmul.f32.gmra.mxu0 %v1099
    %v1101 = vpop.f32.mrf.mxu0
    %v1102 = vadd.f32 %v915, %v1101
    %v1103 = vand.u32 %v218, 4294901760
    %1104 = vmatmul.f32.gmra.mxu0 %v1103
    %v1105 = vpop.f32.mrf.mxu0
    %v1106 = vadd.f32 %v921, %v1105
    %v1107 = vand.u32 %v219, 4294901760
    %1108 = vmatmul.f32.gmra.mxu0 %v1107
    %v1109 = vpop.f32.mrf.mxu0
    %v1110 = vadd.f32 %v927, %v1109
    %v1111 = vand.u32 %v220, 4294901760
    %1112 = vmatmul.f32.gmra.mxu0 %v1111
    %v1113 = vpop.f32.mrf.mxu0
    %v1114 = vadd.f32 %v933, %v1113
    %v1115 = vand.u32 %v221, 4294901760
    %1116 = vmatmul.f32.gmra.mxu0 %v1115
    %v1117 = vpop.f32.mrf.mxu0
    %v1118 = vadd.f32 %v939, %v1117
    %v1119 = vand.u32 %v222, 4294901760
    %1120 = vmatmul.f32.gmra.mxu0 %v1119
    %v1121 = vpop.f32.mrf.mxu0
    %v1122 = vadd.f32 %v945, %v1121
    %v1123 = vand.u32 %v223, 4294901760
    %1124 = vmatmul.f32.gmra.mxu0 %v1123
    %v1125 = vpop.f32.mrf.mxu0
    %v1126 = vadd.f32 %v951, %v1125
    %v1127 = vand.u32 %v224, 4294901760
    %1128 = vmatmul.f32.gmra.mxu0 %v1127
    %v1129 = vpop.f32.mrf.mxu0
    %v1130 = vadd.f32 %v957, %v1129
    %v1131 = vand.u32 %v225, 4294901760
    %1132 = vmatmul.f32.gmra.mxu0 %v1131
    %v1133 = vpop.f32.mrf.mxu0
    %v1134 = vadd.f32 %v963, %v1133
    %v1135 = vand.u32 %v226, 4294901760
    %1136 = vmatmul.f32.gmra.mxu0 %v1135
    %v1137 = vpop.f32.mrf.mxu0
    %v1138 = vadd.f32 %v969, %v1137
    %v1139 = vand.u32 %v227, 4294901760
    %1140 = vmatmul.f32.gmra.mxu0 %v1139
    %v1141 = vpop.f32.mrf.mxu0
    %v1142 = vadd.f32 %v975, %v1141
    %v1143 = vand.u32 %v228, 4294901760
    %1144 = vmatmul.f32.gmra.mxu0 %v1143
    %v1145 = vpop.f32.mrf.mxu0
    %v1146 = vadd.f32 %v981, %v1145
    %v1147 = vand.u32 %v229, 4294901760
    %1148 = vmatmul.f32.gmra.mxu0 %v1147
    %v1149 = vpop.f32.mrf.mxu0
    %v1150 = vadd.f32 %v987, %v1149
    %v1151 = vand.u32 %v230, 4294901760
    %1152 = vmatmul.f32.gmra.mxu0 %v1151
    %v1153 = vpop.f32.mrf.mxu0
    %v1154 = vadd.f32 %v993, %v1153
    %v1155 = vand.u32 %v231, 4294901760
    %1156 = vmatmul.f32.gmra.mxu0 %v1155
    %v1157 = vpop.f32.mrf.mxu0
    %v1158 = vadd.f32 %v999, %v1157
    %v1159 = vand.u32 %v232, 4294901760
    %1160 = vmatmul.f32.gmra.mxu0 %v1159
    %v1161 = vpop.f32.mrf.mxu0
    %v1162 = vadd.f32 %v1005, %v1161
    %v1163 = vand.u32 %v233, 4294901760
    %1164 = vmatmul.f32.gmra.mxu0 %v1163
    %v1165 = vpop.f32.mrf.mxu0
    %v1166 = vadd.f32 %v1011, %v1165
    %v1167 = vand.u32 %v234, 4294901760
    %1168 = vmatmul.f32.gmra.mxu0 %v1167
    %v1169 = vpop.f32.mrf.mxu0
    %v1170 = vadd.f32 %v1017, %v1169
    %v1171 = vand.u32 %v235, 4294901760
    %1172 = vmatmul.f32.gmra.mxu0 %v1171
    %v1173 = vpop.f32.mrf.mxu0
    %v1174 = vadd.f32 %v1023, %v1173
    %v1175 = vand.u32 %v236, 4294901760
    %1176 = vmatmul.f32.gmra.mxu0 %v1175
    %v1177 = vpop.f32.mrf.mxu0
    %v1178 = vadd.f32 %v1029, %v1177
    %v1179 = vand.u32 %v237, 4294901760
    %1180 = vmatmul.f32.gmra.mxu0 %v1179
    %v1181 = vpop.f32.mrf.mxu0
    %v1182 = vadd.f32 %v1035, %v1181
    %v1183 = vand.u32 %v238, 4294901760
    %1184 = vmatmul.f32.gmra.mxu0 %v1183
    %v1185 = vpop.f32.mrf.mxu0
    %v1186 = vadd.f32 %v1041, %v1185
    %1187 = vdwg.mxu0
    %1188 = vmatpush.msra.mxu0 1.0
    %1189 = vmatpush.msra.mxu0 1.0
    %1190 = vmatpush.msra.mxu0 1.0
    %1191 = vmatpush.msra.mxu0 1.0
    %1192 = vmatpush.msra.mxu0 1.0
    %1193 = vmatpush.msra.mxu0 1.0
    %1194 = vmatpush.msra.mxu0 1.0
    %1195 = vmatpush.msra.mxu0 1.0
    %1196 = vmatpush.msra.mxu0 1.0
    %1197 = vmatpush.msra.mxu0 1.0
    %1198 = vmatpush.msra.mxu0 1.0
    %1199 = vmatpush.msra.mxu0 1.0
    %1200 = vmatpush.msra.mxu0 1.0
    %1201 = vmatpush.msra.mxu0 1.0
    %1202 = vmatpush.msra.mxu0 1.0
    %1203 = vmatpush.msra.mxu0 1.0
    %v1204 = vand.u32 %v207, 4294901760
    %1205 = vmatmul.f32.gmra.mxu0 %v1204
    %v1206 = vpop.f32.mrf.mxu0
    %v1207 = vadd.f32 %v1062, %v1206
    %v1208 = vand.u32 %v208, 4294901760
    %1209 = vmatmul.f32.gmra.mxu0 %v1208
    %v1210 = vpop.f32.mrf.mxu0
    %v1211 = vadd.f32 %v1066, %v1210
    %v1212 = vand.u32 %v209, 4294901760
    %1213 = vmatmul.f32.gmra.mxu0 %v1212
    %v1214 = vpop.f32.mrf.mxu0
    %v1215 = vadd.f32 %v1070, %v1214
    %v1216 = vand.u32 %v210, 4294901760
    %1217 = vmatmul.f32.gmra.mxu0 %v1216
    %v1218 = vpop.f32.mrf.mxu0
    %v1219 = vadd.f32 %v1074, %v1218
    %v1220 = vand.u32 %v211, 4294901760
    %1221 = vmatmul.f32.gmra.mxu0 %v1220
    %v1222 = vpop.f32.mrf.mxu0
    %v1223 = vadd.f32 %v1078, %v1222
    %v1224 = vand.u32 %v212, 4294901760
    %1225 = vmatmul.f32.gmra.mxu0 %v1224
    %v1226 = vpop.f32.mrf.mxu0
    %v1227 = vadd.f32 %v1082, %v1226
    %v1228 = vand.u32 %v213, 4294901760
    %1229 = vmatmul.f32.gmra.mxu0 %v1228
    %v1230 = vpop.f32.mrf.mxu0
    %v1231 = vadd.f32 %v1086, %v1230
    %v1232 = vand.u32 %v214, 4294901760
    %1233 = vmatmul.f32.gmra.mxu0 %v1232
    %v1234 = vpop.f32.mrf.mxu0
    %v1235 = vadd.f32 %v1090, %v1234
    %v1236 = vand.u32 %v215, 4294901760
    %1237 = vmatmul.f32.gmra.mxu0 %v1236
    %v1238 = vpop.f32.mrf.mxu0
    %v1239 = vadd.f32 %v1094, %v1238
    %v1240 = vand.u32 %v216, 4294901760
    %1241 = vmatmul.f32.gmra.mxu0 %v1240
    %v1242 = vpop.f32.mrf.mxu0
    %v1243 = vadd.f32 %v1098, %v1242
    %v1244 = vand.u32 %v217, 4294901760
    %1245 = vmatmul.f32.gmra.mxu0 %v1244
    %v1246 = vpop.f32.mrf.mxu0
    %v1247 = vadd.f32 %v1102, %v1246
    %v1248 = vand.u32 %v218, 4294901760
    %1249 = vmatmul.f32.gmra.mxu0 %v1248
    %v1250 = vpop.f32.mrf.mxu0
    %v1251 = vadd.f32 %v1106, %v1250
    %v1252 = vand.u32 %v219, 4294901760
    %1253 = vmatmul.f32.gmra.mxu0 %v1252
    %v1254 = vpop.f32.mrf.mxu0
    %v1255 = vadd.f32 %v1110, %v1254
    %v1256 = vand.u32 %v220, 4294901760
    %1257 = vmatmul.f32.gmra.mxu0 %v1256
    %v1258 = vpop.f32.mrf.mxu0
    %v1259 = vadd.f32 %v1114, %v1258
    %v1260 = vand.u32 %v221, 4294901760
    %1261 = vmatmul.f32.gmra.mxu0 %v1260
    %v1262 = vpop.f32.mrf.mxu0
    %v1263 = vadd.f32 %v1118, %v1262
    %v1264 = vand.u32 %v222, 4294901760
    %1265 = vmatmul.f32.gmra.mxu0 %v1264
    %v1266 = vpop.f32.mrf.mxu0
    %v1267 = vadd.f32 %v1122, %v1266
    %v1268 = vand.u32 %v223, 4294901760
    %1269 = vmatmul.f32.gmra.mxu0 %v1268
    %v1270 = vpop.f32.mrf.mxu0
    %v1271 = vadd.f32 %v1126, %v1270
    %v1272 = vand.u32 %v224, 4294901760
    %1273 = vmatmul.f32.gmra.mxu0 %v1272
    %v1274 = vpop.f32.mrf.mxu0
    %v1275 = vadd.f32 %v1130, %v1274
    %v1276 = vand.u32 %v225, 4294901760
    %1277 = vmatmul.f32.gmra.mxu0 %v1276
    %v1278 = vpop.f32.mrf.mxu0
    %v1279 = vadd.f32 %v1134, %v1278
    %v1280 = vand.u32 %v226, 4294901760
    %1281 = vmatmul.f32.gmra.mxu0 %v1280
    %v1282 = vpop.f32.mrf.mxu0
    %v1283 = vadd.f32 %v1138, %v1282
    %v1284 = vand.u32 %v227, 4294901760
    %1285 = vmatmul.f32.gmra.mxu0 %v1284
    %v1286 = vpop.f32.mrf.mxu0
    %v1287 = vadd.f32 %v1142, %v1286
    %v1288 = vand.u32 %v228, 4294901760
    %1289 = vmatmul.f32.gmra.mxu0 %v1288
    %v1290 = vpop.f32.mrf.mxu0
    %v1291 = vadd.f32 %v1146, %v1290
    %v1292 = vand.u32 %v229, 4294901760
    %1293 = vmatmul.f32.gmra.mxu0 %v1292
    %v1294 = vpop.f32.mrf.mxu0
    %v1295 = vadd.f32 %v1150, %v1294
    %v1296 = vand.u32 %v230, 4294901760
    %1297 = vmatmul.f32.gmra.mxu0 %v1296
    %v1298 = vpop.f32.mrf.mxu0
    %v1299 = vadd.f32 %v1154, %v1298
    %v1300 = vand.u32 %v231, 4294901760
    %1301 = vmatmul.f32.gmra.mxu0 %v1300
    %v1302 = vpop.f32.mrf.mxu0
    %v1303 = vadd.f32 %v1158, %v1302
    %v1304 = vand.u32 %v232, 4294901760
    %1305 = vmatmul.f32.gmra.mxu0 %v1304
    %v1306 = vpop.f32.mrf.mxu0
    %v1307 = vadd.f32 %v1162, %v1306
    %v1308 = vand.u32 %v233, 4294901760
    %1309 = vmatmul.f32.gmra.mxu0 %v1308
    %v1310 = vpop.f32.mrf.mxu0
    %v1311 = vadd.f32 %v1166, %v1310
    %v1312 = vand.u32 %v234, 4294901760
    %1313 = vmatmul.f32.gmra.mxu0 %v1312
    %v1314 = vpop.f32.mrf.mxu0
    %v1315 = vadd.f32 %v1170, %v1314
    %v1316 = vand.u32 %v235, 4294901760
    %1317 = vmatmul.f32.gmra.mxu0 %v1316
    %v1318 = vpop.f32.mrf.mxu0
    %v1319 = vadd.f32 %v1174, %v1318
    %v1320 = vand.u32 %v236, 4294901760
    %1321 = vmatmul.f32.gmra.mxu0 %v1320
    %v1322 = vpop.f32.mrf.mxu0
    %v1323 = vadd.f32 %v1178, %v1322
    %v1324 = vand.u32 %v237, 4294901760
    %1325 = vmatmul.f32.gmra.mxu0 %v1324
    %v1326 = vpop.f32.mrf.mxu0
    %v1327 = vadd.f32 %v1182, %v1326
    %v1328 = vand.u32 %v238, 4294901760
    %1329 = vmatmul.f32.gmra.mxu0 %v1328
    %v1330 = vpop.f32.mrf.mxu0
    %v1331 = vadd.f32 %v1186, %v1330
    %1332 = vdwg.mxu0
    %v1333 = vadd.f32 %v175, %v1207
    %v1334 = vadd.f32 %v176, %v1211
    %v1335 = vadd.f32 %v177, %v1215
    %v1336 = vadd.f32 %v178, %v1219
    %v1337 = vadd.f32 %v179, %v1223
    %v1338 = vadd.f32 %v180, %v1227
    %v1339 = vadd.f32 %v181, %v1231
    %v1340 = vadd.f32 %v182, %v1235
    %v1341 = vadd.f32 %v183, %v1239
    %v1342 = vadd.f32 %v184, %v1243
    %v1343 = vadd.f32 %v185, %v1247
    %v1344 = vadd.f32 %v186, %v1251
    %v1345 = vadd.f32 %v187, %v1255
    %v1346 = vadd.f32 %v188, %v1259
    %v1347 = vadd.f32 %v189, %v1263
    %v1348 = vadd.f32 %v190, %v1267
    %v1349 = vadd.f32 %v191, %v1271
    %v1350 = vadd.f32 %v192, %v1275
    %v1351 = vadd.f32 %v193, %v1279
    %v1352 = vadd.f32 %v194, %v1283
    %v1353 = vadd.f32 %v195, %v1287
    %v1354 = vadd.f32 %v196, %v1291
    %v1355 = vadd.f32 %v197, %v1295
    %v1356 = vadd.f32 %v198, %v1299
    %v1357 = vadd.f32 %v199, %v1303
    %v1358 = vadd.f32 %v200, %v1307
    %v1359 = vadd.f32 %v201, %v1311
    %v1360 = vadd.f32 %v202, %v1315
    %v1361 = vadd.f32 %v203, %v1319
    %v1362 = vadd.f32 %v204, %v1323
    %v1363 = vadd.f32 %v205, %v1327
    %v1364 = vadd.f32 %v206, %v1331
    %vm1365 = vcmask 7168
    %1366 = vst.msk [vmem:[#allocation2] sm:$0xff] %vm1365, %v1333
    %1367 = vst.msk [vmem:[#allocation2 + $0x8] sm:$0xff] %vm1365, %v1334
    %1368 = vst.msk [vmem:[#allocation2 + $0x10] sm:$0xff] %vm1365, %v1335
    %1369 = vst.msk [vmem:[#allocation2 + $0x18] sm:$0xff] %vm1365, %v1336
    %1370 = vst.msk [vmem:[#allocation2 + $0x20] sm:$0xff] %vm1365, %v1337
    %1371 = vst.msk [vmem:[#allocation2 + $0x28] sm:$0xff] %vm1365, %v1338
    %1372 = vst.msk [vmem:[#allocation2 + $0x30] sm:$0xff] %vm1365, %v1339
    %1373 = vst.msk [vmem:[#allocation2 + $0x38] sm:$0xff] %vm1365, %v1340
    %1374 = vst.msk [vmem:[#allocation2 + $0x40] sm:$0xff] %vm1365, %v1341
    %1375 = vst.msk [vmem:[#allocation2 + $0x48] sm:$0xff] %vm1365, %v1342
    %1376 = vst.msk [vmem:[#allocation2 + $0x50] sm:$0xff] %vm1365, %v1343
    %1377 = vst.msk [vmem:[#allocation2 + $0x58] sm:$0xff] %vm1365, %v1344
    %1378 = vst.msk [vmem:[#allocation2 + $0x60] sm:$0xff] %vm1365, %v1345
    %1379 = vst.msk [vmem:[#allocation2 + $0x68] sm:$0xff] %vm1365, %v1346
    %1380 = vst.msk [vmem:[#allocation2 + $0x70] sm:$0xff] %vm1365, %v1347
    %1381 = vst.msk [vmem:[#allocation2 + $0x78] sm:$0xff] %vm1365, %v1348
    %1382 = vst.msk [vmem:[#allocation2 + $0x80] sm:$0xff] %vm1365, %v1349
    %1383 = vst.msk [vmem:[#allocation2 + $0x88] sm:$0xff] %vm1365, %v1350
    %1384 = vst.msk [vmem:[#allocation2 + $0x90] sm:$0xff] %vm1365, %v1351
    %1385 = vst.msk [vmem:[#allocation2 + $0x98] sm:$0xff] %vm1365, %v1352
    %1386 = vst.msk [vmem:[#allocation2 + $0xa0] sm:$0xff] %vm1365, %v1353
    %1387 = vst.msk [vmem:[#allocation2 + $0xa8] sm:$0xff] %vm1365, %v1354
    %1388 = vst.msk [vmem:[#allocation2 + $0xb0] sm:$0xff] %vm1365, %v1355
    %1389 = vst.msk [vmem:[#allocation2 + $0xb8] sm:$0xff] %vm1365, %v1356
    %1390 = vst.msk [vmem:[#allocation2 + $0xc0] sm:$0xff] %vm1365, %v1357
    %1391 = vst.msk [vmem:[#allocation2 + $0xc8] sm:$0xff] %vm1365, %v1358
    %1392 = vst.msk [vmem:[#allocation2 + $0xd0] sm:$0xff] %vm1365, %v1359
    %1393 = vst.msk [vmem:[#allocation2 + $0xd8] sm:$0xff] %vm1365, %v1360
    %1394 = vst.msk [vmem:[#allocation2 + $0xe0] sm:$0xff] %vm1365, %v1361
    %1395 = vst.msk [vmem:[#allocation2 + $0xe8] sm:$0xff] %vm1365, %v1362
    %1396 = vst.msk [vmem:[#allocation2 + $0xf0] sm:$0xff] %vm1365, %v1363
    %1397 = vst.msk [vmem:[#allocation2 + $0xf8] sm:$0xff] %vm1365, %v1364
    // Predicated region
    $region30: #{tpu_custom_call.1} parent=1 // pred_check
      %p1398 = pneg %p42
    $region31: #{tpu_custom_call.1} parent=1 // pred_check_branch
      %1400 = sbr.rel (%p1398) target = $region33
    $region32: #{tpu_custom_call.1} parent=1 // pred_region
      %v1401 = vld [vmem:[#allocation2] sm:$0xff]
      %v1402 = vld [vmem:[#allocation2 + $0x8] sm:$0xff]
      %v1403 = vld [vmem:[#allocation2 + $0x10] sm:$0xff]
      %v1404 = vld [vmem:[#allocation2 + $0x18] sm:$0xff]
      %v1405 = vld [vmem:[#allocation2 + $0x20] sm:$0xff]
      %v1406 = vld [vmem:[#allocation2 + $0x28] sm:$0xff]
      %v1407 = vld [vmem:[#allocation2 + $0x30] sm:$0xff]
      %v1408 = vld [vmem:[#allocation2 + $0x38] sm:$0xff]
      %v1409 = vld [vmem:[#allocation2 + $0x40] sm:$0xff]
      %v1410 = vld [vmem:[#allocation2 + $0x48] sm:$0xff]
      %v1411 = vld [vmem:[#allocation2 + $0x50] sm:$0xff]
      %v1412 = vld [vmem:[#allocation2 + $0x58] sm:$0xff]
      %v1413 = vld [vmem:[#allocation2 + $0x60] sm:$0xff]
      %v1414 = vld [vmem:[#allocation2 + $0x68] sm:$0xff]
      %v1415 = vld [vmem:[#allocation2 + $0x70] sm:$0xff]
      %v1416 = vld [vmem:[#allocation2 + $0x78] sm:$0xff]
      %v1417 = vld [vmem:[#allocation2 + $0x80] sm:$0xff]
      %v1418 = vld [vmem:[#allocation2 + $0x88] sm:$0xff]
      %v1419 = vld [vmem:[#allocation2 + $0x90] sm:$0xff]
      %v1420 = vld [vmem:[#allocation2 + $0x98] sm:$0xff]
      %v1421 = vld [vmem:[#allocation2 + $0xa0] sm:$0xff]
      %v1422 = vld [vmem:[#allocation2 + $0xa8] sm:$0xff]
      %v1423 = vld [vmem:[#allocation2 + $0xb0] sm:$0xff]
      %v1424 = vld [vmem:[#allocation2 + $0xb8] sm:$0xff]
      %v1425 = vld [vmem:[#allocation2 + $0xc0] sm:$0xff]
      %v1426 = vld [vmem:[#allocation2 + $0xc8] sm:$0xff]
      %v1427 = vld [vmem:[#allocation2 + $0xd0] sm:$0xff]
      %v1428 = vld [vmem:[#allocation2 + $0xd8] sm:$0xff]
      %v1429 = vld [vmem:[#allocation2 + $0xe0] sm:$0xff]
      %v1430 = vld [vmem:[#allocation2 + $0xe8] sm:$0xff]
      %v1431 = vld [vmem:[#allocation2 + $0xf0] sm:$0xff]
      %v1432 = vld [vmem:[#allocation2 + $0xf8] sm:$0xff]
      %v1433 = vrsqrt.pop %v1401
      %v1434 = vmul.f32 %v1433, %v1401
      %v1435 = vmul.f32 %v1434, %v1433
      %v1436 = vmul.f32 0.5, %v1435
      %v1437 = vsub.f32 1.5, %v1436
      %v1438 = vmul.f32 %v1433, %v1437
      %v1439 = vmul.f32 %v1401, %v1438
      %vm1440 = vcmp.eq.f32.partialorder %v1401, inf
      %v1441 = vsel %vm1440, %v1401, %v1439
      %vm1442 = vcmp.eq.f32.partialorder %v1401, 0.0
      %v1443 = vand.u32 %v1401, 2147483648
      %v1444 = vsel %vm1442, %v1443, %v1441
      %v1445 = vrsqrt.pop %v1402
      %v1446 = vmul.f32 %v1445, %v1402
      %v1447 = vmul.f32 %v1446, %v1445
      %v1448 = vmul.f32 0.5, %v1447
      %v1449 = vsub.f32 1.5, %v1448
      %v1450 = vmul.f32 %v1445, %v1449
      %v1451 = vmul.f32 %v1402, %v1450
      %vm1452 = vcmp.eq.f32.partialorder %v1402, inf
      %v1453 = vsel %vm1452, %v1402, %v1451
      %vm1454 = vcmp.eq.f32.partialorder %v1402, 0.0
      %v1455 = vand.u32 %v1402, 2147483648
      %v1456 = vsel %vm1454, %v1455, %v1453
      %v1457 = vrsqrt.pop %v1403
      %v1458 = vmul.f32 %v1457, %v1403
      %v1459 = vmul.f32 %v1458, %v1457
      %v1460 = vmul.f32 0.5, %v1459
      %v1461 = vsub.f32 1.5, %v1460
      %v1462 = vmul.f32 %v1457, %v1461
      %v1463 = vmul.f32 %v1403, %v1462
      %vm1464 = vcmp.eq.f32.partialorder %v1403, inf
      %v1465 = vsel %vm1464, %v1403, %v1463
      %vm1466 = vcmp.eq.f32.partialorder %v1403, 0.0
      %v1467 = vand.u32 %v1403, 2147483648
      %v1468 = vsel %vm1466, %v1467, %v1465
      %v1469 = vrsqrt.pop %v1404
      %v1470 = vmul.f32 %v1469, %v1404
      %v1471 = vmul.f32 %v1470, %v1469
      %v1472 = vmul.f32 0.5, %v1471
      %v1473 = vsub.f32 1.5, %v1472
      %v1474 = vmul.f32 %v1469, %v1473
      %v1475 = vmul.f32 %v1404, %v1474
      %vm1476 = vcmp.eq.f32.partialorder %v1404, inf
      %v1477 = vsel %vm1476, %v1404, %v1475
      %vm1478 = vcmp.eq.f32.partialorder %v1404, 0.0
      %v1479 = vand.u32 %v1404, 2147483648
      %v1480 = vsel %vm1478, %v1479, %v1477
      %v1481 = vrsqrt.pop %v1405
      %v1482 = vmul.f32 %v1481, %v1405
      %v1483 = vmul.f32 %v1482, %v1481
      %v1484 = vmul.f32 0.5, %v1483
      %v1485 = vsub.f32 1.5, %v1484
      %v1486 = vmul.f32 %v1481, %v1485
      %v1487 = vmul.f32 %v1405, %v1486
      %vm1488 = vcmp.eq.f32.partialorder %v1405, inf
      %v1489 = vsel %vm1488, %v1405, %v1487
      %vm1490 = vcmp.eq.f32.partialorder %v1405, 0.0
      %v1491 = vand.u32 %v1405, 2147483648
      %v1492 = vsel %vm1490, %v1491, %v1489
      %v1493 = vrsqrt.pop %v1406
      %v1494 = vmul.f32 %v1493, %v1406
      %v1495 = vmul.f32 %v1494, %v1493
      %v1496 = vmul.f32 0.5, %v1495
      %v1497 = vsub.f32 1.5, %v1496
      %v1498 = vmul.f32 %v1493, %v1497
      %v1499 = vmul.f32 %v1406, %v1498
      %vm1500 = vcmp.eq.f32.partialorder %v1406, inf
      %v1501 = vsel %vm1500, %v1406, %v1499
      %vm1502 = vcmp.eq.f32.partialorder %v1406, 0.0
      %v1503 = vand.u32 %v1406, 2147483648
      %v1504 = vsel %vm1502, %v1503, %v1501
      %v1505 = vrsqrt.pop %v1407
      %v1506 = vmul.f32 %v1505, %v1407
      %v1507 = vmul.f32 %v1506, %v1505
      %v1508 = vmul.f32 0.5, %v1507
      %v1509 = vsub.f32 1.5, %v1508
      %v1510 = vmul.f32 %v1505, %v1509
      %v1511 = vmul.f32 %v1407, %v1510
      %vm1512 = vcmp.eq.f32.partialorder %v1407, inf
      %v1513 = vsel %vm1512, %v1407, %v1511
      %vm1514 = vcmp.eq.f32.partialorder %v1407, 0.0
      %v1515 = vand.u32 %v1407, 2147483648
      %v1516 = vsel %vm1514, %v1515, %v1513
      %v1517 = vrsqrt.pop %v1408
      %v1518 = vmul.f32 %v1517, %v1408
      %v1519 = vmul.f32 %v1518, %v1517
      %v1520 = vmul.f32 0.5, %v1519
      %v1521 = vsub.f32 1.5, %v1520
      %v1522 = vmul.f32 %v1517, %v1521
      %v1523 = vmul.f32 %v1408, %v1522
      %vm1524 = vcmp.eq.f32.partialorder %v1408, inf
      %v1525 = vsel %vm1524, %v1408, %v1523
      %vm1526 = vcmp.eq.f32.partialorder %v1408, 0.0
      %v1527 = vand.u32 %v1408, 2147483648
      %v1528 = vsel %vm1526, %v1527, %v1525
      %v1529 = vrsqrt.pop %v1409
      %v1530 = vmul.f32 %v1529, %v1409
      %v1531 = vmul.f32 %v1530, %v1529
      %v1532 = vmul.f32 0.5, %v1531
      %v1533 = vsub.f32 1.5, %v1532
      %v1534 = vmul.f32 %v1529, %v1533
      %v1535 = vmul.f32 %v1409, %v1534
      %vm1536 = vcmp.eq.f32.partialorder %v1409, inf
      %v1537 = vsel %vm1536, %v1409, %v1535
      %vm1538 = vcmp.eq.f32.partialorder %v1409, 0.0
      %v1539 = vand.u32 %v1409, 2147483648
      %v1540 = vsel %vm1538, %v1539, %v1537
      %v1541 = vrsqrt.pop %v1410
      %v1542 = vmul.f32 %v1541, %v1410
      %v1543 = vmul.f32 %v1542, %v1541
      %v1544 = vmul.f32 0.5, %v1543
      %v1545 = vsub.f32 1.5, %v1544
      %v1546 = vmul.f32 %v1541, %v1545
      %v1547 = vmul.f32 %v1410, %v1546
      %vm1548 = vcmp.eq.f32.partialorder %v1410, inf
      %v1549 = vsel %vm1548, %v1410, %v1547
      %vm1550 = vcmp.eq.f32.partialorder %v1410, 0.0
      %v1551 = vand.u32 %v1410, 2147483648
      %v1552 = vsel %vm1550, %v1551, %v1549
      %v1553 = vrsqrt.pop %v1411
      %v1554 = vmul.f32 %v1553, %v1411
      %v1555 = vmul.f32 %v1554, %v1553
      %v1556 = vmul.f32 0.5, %v1555
      %v1557 = vsub.f32 1.5, %v1556
      %v1558 = vmul.f32 %v1553, %v1557
      %v1559 = vmul.f32 %v1411, %v1558
      %vm1560 = vcmp.eq.f32.partialorder %v1411, inf
      %v1561 = vsel %vm1560, %v1411, %v1559
      %vm1562 = vcmp.eq.f32.partialorder %v1411, 0.0
      %v1563 = vand.u32 %v1411, 2147483648
      %v1564 = vsel %vm1562, %v1563, %v1561
      %v1565 = vrsqrt.pop %v1412
      %v1566 = vmul.f32 %v1565, %v1412
      %v1567 = vmul.f32 %v1566, %v1565
      %v1568 = vmul.f32 0.5, %v1567
      %v1569 = vsub.f32 1.5, %v1568
      %v1570 = vmul.f32 %v1565, %v1569
      %v1571 = vmul.f32 %v1412, %v1570
      %vm1572 = vcmp.eq.f32.partialorder %v1412, inf
      %v1573 = vsel %vm1572, %v1412, %v1571
      %vm1574 = vcmp.eq.f32.partialorder %v1412, 0.0
      %v1575 = vand.u32 %v1412, 2147483648
      %v1576 = vsel %vm1574, %v1575, %v1573
      %v1577 = vrsqrt.pop %v1413
      %v1578 = vmul.f32 %v1577, %v1413
      %v1579 = vmul.f32 %v1578, %v1577
      %v1580 = vmul.f32 0.5, %v1579
      %v1581 = vsub.f32 1.5, %v1580
      %v1582 = vmul.f32 %v1577, %v1581
      %v1583 = vmul.f32 %v1413, %v1582
      %vm1584 = vcmp.eq.f32.partialorder %v1413, inf
      %v1585 = vsel %vm1584, %v1413, %v1583
      %vm1586 = vcmp.eq.f32.partialorder %v1413, 0.0
      %v1587 = vand.u32 %v1413, 2147483648
      %v1588 = vsel %vm1586, %v1587, %v1585
      %v1589 = vrsqrt.pop %v1414
      %v1590 = vmul.f32 %v1589, %v1414
      %v1591 = vmul.f32 %v1590, %v1589
      %v1592 = vmul.f32 0.5, %v1591
      %v1593 = vsub.f32 1.5, %v1592
      %v1594 = vmul.f32 %v1589, %v1593
      %v1595 = vmul.f32 %v1414, %v1594
      %vm1596 = vcmp.eq.f32.partialorder %v1414, inf
      %v1597 = vsel %vm1596, %v1414, %v1595
      %vm1598 = vcmp.eq.f32.partialorder %v1414, 0.0
      %v1599 = vand.u32 %v1414, 2147483648
      %v1600 = vsel %vm1598, %v1599, %v1597
      %v1601 = vrsqrt.pop %v1415
      %v1602 = vmul.f32 %v1601, %v1415
      %v1603 = vmul.f32 %v1602, %v1601
      %v1604 = vmul.f32 0.5, %v1603
      %v1605 = vsub.f32 1.5, %v1604
      %v1606 = vmul.f32 %v1601, %v1605
      %v1607 = vmul.f32 %v1415, %v1606
      %vm1608 = vcmp.eq.f32.partialorder %v1415, inf
      %v1609 = vsel %vm1608, %v1415, %v1607
      %vm1610 = vcmp.eq.f32.partialorder %v1415, 0.0
      %v1611 = vand.u32 %v1415, 2147483648
      %v1612 = vsel %vm1610, %v1611, %v1609
      %v1613 = vrsqrt.pop %v1416
      %v1614 = vmul.f32 %v1613, %v1416
      %v1615 = vmul.f32 %v1614, %v1613
      %v1616 = vmul.f32 0.5, %v1615
      %v1617 = vsub.f32 1.5, %v1616
      %v1618 = vmul.f32 %v1613, %v1617
      %v1619 = vmul.f32 %v1416, %v1618
      %vm1620 = vcmp.eq.f32.partialorder %v1416, inf
      %v1621 = vsel %vm1620, %v1416, %v1619
      %vm1622 = vcmp.eq.f32.partialorder %v1416, 0.0
      %v1623 = vand.u32 %v1416, 2147483648
      %v1624 = vsel %vm1622, %v1623, %v1621
      %v1625 = vrsqrt.pop %v1417
      %v1626 = vmul.f32 %v1625, %v1417
      %v1627 = vmul.f32 %v1626, %v1625
      %v1628 = vmul.f32 0.5, %v1627
      %v1629 = vsub.f32 1.5, %v1628
      %v1630 = vmul.f32 %v1625, %v1629
      %v1631 = vmul.f32 %v1417, %v1630
      %vm1632 = vcmp.eq.f32.partialorder %v1417, inf
      %v1633 = vsel %vm1632, %v1417, %v1631
      %vm1634 = vcmp.eq.f32.partialorder %v1417, 0.0
      %v1635 = vand.u32 %v1417, 2147483648
      %v1636 = vsel %vm1634, %v1635, %v1633
      %v1637 = vrsqrt.pop %v1418
      %v1638 = vmul.f32 %v1637, %v1418
      %v1639 = vmul.f32 %v1638, %v1637
      %v1640 = vmul.f32 0.5, %v1639
      %v1641 = vsub.f32 1.5, %v1640
      %v1642 = vmul.f32 %v1637, %v1641
      %v1643 = vmul.f32 %v1418, %v1642
      %vm1644 = vcmp.eq.f32.partialorder %v1418, inf
      %v1645 = vsel %vm1644, %v1418, %v1643
      %vm1646 = vcmp.eq.f32.partialorder %v1418, 0.0
      %v1647 = vand.u32 %v1418, 2147483648
      %v1648 = vsel %vm1646, %v1647, %v1645
      %v1649 = vrsqrt.pop %v1419
      %v1650 = vmul.f32 %v1649, %v1419
      %v1651 = vmul.f32 %v1650, %v1649
      %v1652 = vmul.f32 0.5, %v1651
      %v1653 = vsub.f32 1.5, %v1652
      %v1654 = vmul.f32 %v1649, %v1653
      %v1655 = vmul.f32 %v1419, %v1654
      %vm1656 = vcmp.eq.f32.partialorder %v1419, inf
      %v1657 = vsel %vm1656, %v1419, %v1655
      %vm1658 = vcmp.eq.f32.partialorder %v1419, 0.0
      %v1659 = vand.u32 %v1419, 2147483648
      %v1660 = vsel %vm1658, %v1659, %v1657
      %v1661 = vrsqrt.pop %v1420
      %v1662 = vmul.f32 %v1661, %v1420
      %v1663 = vmul.f32 %v1662, %v1661
      %v1664 = vmul.f32 0.5, %v1663
      %v1665 = vsub.f32 1.5, %v1664
      %v1666 = vmul.f32 %v1661, %v1665
      %v1667 = vmul.f32 %v1420, %v1666
      %vm1668 = vcmp.eq.f32.partialorder %v1420, inf
      %v1669 = vsel %vm1668, %v1420, %v1667
      %vm1670 = vcmp.eq.f32.partialorder %v1420, 0.0
      %v1671 = vand.u32 %v1420, 2147483648
      %v1672 = vsel %vm1670, %v1671, %v1669
      %v1673 = vrsqrt.pop %v1421
      %v1674 = vmul.f32 %v1673, %v1421
      %v1675 = vmul.f32 %v1674, %v1673
      %v1676 = vmul.f32 0.5, %v1675
      %v1677 = vsub.f32 1.5, %v1676
      %v1678 = vmul.f32 %v1673, %v1677
      %v1679 = vmul.f32 %v1421, %v1678
      %vm1680 = vcmp.eq.f32.partialorder %v1421, inf
      %v1681 = vsel %vm1680, %v1421, %v1679
      %vm1682 = vcmp.eq.f32.partialorder %v1421, 0.0
      %v1683 = vand.u32 %v1421, 2147483648
      %v1684 = vsel %vm1682, %v1683, %v1681
      %v1685 = vrsqrt.pop %v1422
      %v1686 = vmul.f32 %v1685, %v1422
      %v1687 = vmul.f32 %v1686, %v1685
      %v1688 = vmul.f32 0.5, %v1687
      %v1689 = vsub.f32 1.5, %v1688
      %v1690 = vmul.f32 %v1685, %v1689
      %v1691 = vmul.f32 %v1422, %v1690
      %vm1692 = vcmp.eq.f32.partialorder %v1422, inf
      %v1693 = vsel %vm1692, %v1422, %v1691
      %vm1694 = vcmp.eq.f32.partialorder %v1422, 0.0
      %v1695 = vand.u32 %v1422, 2147483648
      %v1696 = vsel %vm1694, %v1695, %v1693
      %v1697 = vrsqrt.pop %v1423
      %v1698 = vmul.f32 %v1697, %v1423
      %v1699 = vmul.f32 %v1698, %v1697
      %v1700 = vmul.f32 0.5, %v1699
      %v1701 = vsub.f32 1.5, %v1700
      %v1702 = vmul.f32 %v1697, %v1701
      %v1703 = vmul.f32 %v1423, %v1702
      %vm1704 = vcmp.eq.f32.partialorder %v1423, inf
      %v1705 = vsel %vm1704, %v1423, %v1703
      %vm1706 = vcmp.eq.f32.partialorder %v1423, 0.0
      %v1707 = vand.u32 %v1423, 2147483648
      %v1708 = vsel %vm1706, %v1707, %v1705
      %v1709 = vrsqrt.pop %v1424
      %v1710 = vmul.f32 %v1709, %v1424
      %v1711 = vmul.f32 %v1710, %v1709
      %v1712 = vmul.f32 0.5, %v1711
      %v1713 = vsub.f32 1.5, %v1712
      %v1714 = vmul.f32 %v1709, %v1713
      %v1715 = vmul.f32 %v1424, %v1714
      %vm1716 = vcmp.eq.f32.partialorder %v1424, inf
      %v1717 = vsel %vm1716, %v1424, %v1715
      %vm1718 = vcmp.eq.f32.partialorder %v1424, 0.0
      %v1719 = vand.u32 %v1424, 2147483648
      %v1720 = vsel %vm1718, %v1719, %v1717
      %v1721 = vrsqrt.pop %v1425
      %v1722 = vmul.f32 %v1721, %v1425
      %v1723 = vmul.f32 %v1722, %v1721
      %v1724 = vmul.f32 0.5, %v1723
      %v1725 = vsub.f32 1.5, %v1724
      %v1726 = vmul.f32 %v1721, %v1725
      %v1727 = vmul.f32 %v1425, %v1726
      %vm1728 = vcmp.eq.f32.partialorder %v1425, inf
      %v1729 = vsel %vm1728, %v1425, %v1727
      %vm1730 = vcmp.eq.f32.partialorder %v1425, 0.0
      %v1731 = vand.u32 %v1425, 2147483648
      %v1732 = vsel %vm1730, %v1731, %v1729
      %v1733 = vrsqrt.pop %v1426
      %v1734 = vmul.f32 %v1733, %v1426
      %v1735 = vmul.f32 %v1734, %v1733
      %v1736 = vmul.f32 0.5, %v1735
      %v1737 = vsub.f32 1.5, %v1736
      %v1738 = vmul.f32 %v1733, %v1737
      %v1739 = vmul.f32 %v1426, %v1738
      %vm1740 = vcmp.eq.f32.partialorder %v1426, inf
      %v1741 = vsel %vm1740, %v1426, %v1739
      %vm1742 = vcmp.eq.f32.partialorder %v1426, 0.0
      %v1743 = vand.u32 %v1426, 2147483648
      %v1744 = vsel %vm1742, %v1743, %v1741
      %v1745 = vrsqrt.pop %v1427
      %v1746 = vmul.f32 %v1745, %v1427
      %v1747 = vmul.f32 %v1746, %v1745
      %v1748 = vmul.f32 0.5, %v1747
      %v1749 = vsub.f32 1.5, %v1748
      %v1750 = vmul.f32 %v1745, %v1749
      %v1751 = vmul.f32 %v1427, %v1750
      %vm1752 = vcmp.eq.f32.partialorder %v1427, inf
      %v1753 = vsel %vm1752, %v1427, %v1751
      %vm1754 = vcmp.eq.f32.partialorder %v1427, 0.0
      %v1755 = vand.u32 %v1427, 2147483648
      %v1756 = vsel %vm1754, %v1755, %v1753
      %v1757 = vrsqrt.pop %v1428
      %v1758 = vmul.f32 %v1757, %v1428
      %v1759 = vmul.f32 %v1758, %v1757
      %v1760 = vmul.f32 0.5, %v1759
      %v1761 = vsub.f32 1.5, %v1760
      %v1762 = vmul.f32 %v1757, %v1761
      %v1763 = vmul.f32 %v1428, %v1762
      %vm1764 = vcmp.eq.f32.partialorder %v1428, inf
      %v1765 = vsel %vm1764, %v1428, %v1763
      %vm1766 = vcmp.eq.f32.partialorder %v1428, 0.0
      %v1767 = vand.u32 %v1428, 2147483648
      %v1768 = vsel %vm1766, %v1767, %v1765
      %v1769 = vrsqrt.pop %v1429
      %v1770 = vmul.f32 %v1769, %v1429
      %v1771 = vmul.f32 %v1770, %v1769
      %v1772 = vmul.f32 0.5, %v1771
      %v1773 = vsub.f32 1.5, %v1772
      %v1774 = vmul.f32 %v1769, %v1773
      %v1775 = vmul.f32 %v1429, %v1774
      %vm1776 = vcmp.eq.f32.partialorder %v1429, inf
      %v1777 = vsel %vm1776, %v1429, %v1775
      %vm1778 = vcmp.eq.f32.partialorder %v1429, 0.0
      %v1779 = vand.u32 %v1429, 2147483648
      %v1780 = vsel %vm1778, %v1779, %v1777
      %v1781 = vrsqrt.pop %v1430
      %v1782 = vmul.f32 %v1781, %v1430
      %v1783 = vmul.f32 %v1782, %v1781
      %v1784 = vmul.f32 0.5, %v1783
      %v1785 = vsub.f32 1.5, %v1784
      %v1786 = vmul.f32 %v1781, %v1785
      %v1787 = vmul.f32 %v1430, %v1786
      %vm1788 = vcmp.eq.f32.partialorder %v1430, inf
      %v1789 = vsel %vm1788, %v1430, %v1787
      %vm1790 = vcmp.eq.f32.partialorder %v1430, 0.0
      %v1791 = vand.u32 %v1430, 2147483648
      %v1792 = vsel %vm1790, %v1791, %v1789
      %v1793 = vrsqrt.pop %v1431
      %v1794 = vmul.f32 %v1793, %v1431
      %v1795 = vmul.f32 %v1794, %v1793
      %v1796 = vmul.f32 0.5, %v1795
      %v1797 = vsub.f32 1.5, %v1796
      %v1798 = vmul.f32 %v1793, %v1797
      %v1799 = vmul.f32 %v1431, %v1798
      %vm1800 = vcmp.eq.f32.partialorder %v1431, inf
      %v1801 = vsel %vm1800, %v1431, %v1799
      %vm1802 = vcmp.eq.f32.partialorder %v1431, 0.0
      %v1803 = vand.u32 %v1431, 2147483648
      %v1804 = vsel %vm1802, %v1803, %v1801
      %v1805 = vrsqrt.pop %v1432
      %v1806 = vmul.f32 %v1805, %v1432
      %v1807 = vmul.f32 %v1806, %v1805
      %v1808 = vmul.f32 0.5, %v1807
      %v1809 = vsub.f32 1.5, %v1808
      %v1810 = vmul.f32 %v1805, %v1809
      %v1811 = vmul.f32 %v1432, %v1810
      %vm1812 = vcmp.eq.f32.partialorder %v1432, inf
      %v1813 = vsel %vm1812, %v1432, %v1811
      %vm1814 = vcmp.eq.f32.partialorder %v1432, 0.0
      %v1815 = vand.u32 %v1432, 2147483648
      %v1816 = vsel %vm1814, %v1815, %v1813
      %1817 = vxpose.xlu0.b32.start [1/16] %v1444, 128
      %1818 = vxpose.xlu0.b32.cont [2/16] %v1456, 128
      %1819 = vxpose.xlu0.b32.cont [3/16] %v1468, 128
      %1820 = vxpose.xlu0.b32.cont [4/16] %v1480, 128
      %1821 = vxpose.xlu0.b32.cont [5/16] %v1492, 128
      %1822 = vxpose.xlu0.b32.cont [6/16] %v1504, 128
      %1823 = vxpose.xlu0.b32.cont [7/16] %v1516, 128
      %1824 = vxpose.xlu0.b32.cont [8/16] %v1528, 128
      %1825 = vxpose.xlu0.b32.cont [9/16] %v1540, 128
      %1826 = vxpose.xlu0.b32.cont [10/16] %v1552, 128
      %1827 = vxpose.xlu0.b32.cont [11/16] %v1564, 128
      %1828 = vxpose.xlu0.b32.cont [12/16] %v1576, 128
      %1829 = vxpose.xlu0.b32.cont [13/16] %v1588, 128
      %1830 = vxpose.xlu0.b32.cont [14/16] %v1600, 128
      %1831 = vxpose.xlu0.b32.cont [15/16] %v1612, 128
      %1832 = vxpose.xlu0.b32.end [16/16] %v1624, 128
      %v1833 = vpop.trf.xlu0
      %v1834 = vpop.trf.xlu0
      %v1835 = vpop.trf.xlu0
      %v1836 = vpop.trf.xlu0
      %v1837 = vpop.trf.xlu0
      %v1838 = vpop.trf.xlu0
      %v1839 = vpop.trf.xlu0
      %v1840 = vpop.trf.xlu0
      %v1841 = vpop.trf.xlu0
      %v1842 = vpop.trf.xlu0
      %v1843 = vpop.trf.xlu0
      %v1844 = vpop.trf.xlu0
      %v1845 = vpop.trf.xlu0
      %v1846 = vpop.trf.xlu0
      %v1847 = vpop.trf.xlu0
      %v1848 = vpop.trf.xlu0
      %1849 = vxpose.xlu0.b32.start [1/16] %v1636, 128
      %1850 = vxpose.xlu0.b32.cont [2/16] %v1648, 128
      %1851 = vxpose.xlu0.b32.cont [3/16] %v1660, 128
      %1852 = vxpose.xlu0.b32.cont [4/16] %v1672, 128
      %1853 = vxpose.xlu0.b32.cont [5/16] %v1684, 128
      %1854 = vxpose.xlu0.b32.cont [6/16] %v1696, 128
      %1855 = vxpose.xlu0.b32.cont [7/16] %v1708, 128
      %1856 = vxpose.xlu0.b32.cont [8/16] %v1720, 128
      %1857 = vxpose.xlu0.b32.cont [9/16] %v1732, 128
      %1858 = vxpose.xlu0.b32.cont [10/16] %v1744, 128
      %1859 = vxpose.xlu0.b32.cont [11/16] %v1756, 128
      %1860 = vxpose.xlu0.b32.cont [12/16] %v1768, 128
      %1861 = vxpose.xlu0.b32.cont [13/16] %v1780, 128
      %1862 = vxpose.xlu0.b32.cont [14/16] %v1792, 128
      %1863 = vxpose.xlu0.b32.cont [15/16] %v1804, 128
      %1864 = vxpose.xlu0.b32.end [16/16] %v1816, 128
      %v1865 = vpop.trf.xlu0
      %v1866 = vpop.trf.xlu0
      %v1867 = vpop.trf.xlu0
      %v1868 = vpop.trf.xlu0
      %v1869 = vpop.trf.xlu0
      %v1870 = vpop.trf.xlu0
      %v1871 = vpop.trf.xlu0
      %v1872 = vpop.trf.xlu0
      %v1873 = vpop.trf.xlu0
      %v1874 = vpop.trf.xlu0
      %v1875 = vpop.trf.xlu0
      %v1876 = vpop.trf.xlu0
      %v1877 = vpop.trf.xlu0
      %v1878 = vpop.trf.xlu0
      %v1879 = vpop.trf.xlu0
      %v1880 = vpop.trf.xlu0
      %v1881 = vld [vmem:[%s2] sm:$0xff]
      %v1882 = vld [vmem:[%s2 + $0x8] sm:$0xff]
      %v1883 = vld [vmem:[%s2 + $0x10] sm:$0xff]
      %v1884 = vld [vmem:[%s2 + $0x18] sm:$0xff]
      %v1885 = vld [vmem:[%s2 + $0x20] sm:$0xff]
      %v1886 = vld [vmem:[%s2 + $0x28] sm:$0xff]
      %v1887 = vld [vmem:[%s2 + $0x30] sm:$0xff]
      %v1888 = vld [vmem:[%s2 + $0x38] sm:$0xff]
      %v1889 = vld [vmem:[%s2 + $0x40] sm:$0xff]
      %v1890 = vld [vmem:[%s2 + $0x48] sm:$0xff]
      %v1891 = vld [vmem:[%s2 + $0x50] sm:$0xff]
      %v1892 = vld [vmem:[%s2 + $0x58] sm:$0xff]
      %v1893 = vld [vmem:[%s2 + $0x60] sm:$0xff]
      %v1894 = vld [vmem:[%s2 + $0x68] sm:$0xff]
      %v1895 = vld [vmem:[%s2 + $0x70] sm:$0xff]
      %v1896 = vld [vmem:[%s2 + $0x78] sm:$0xff]
      %v1897 = vld [vmem:[%s2 + $0x80] sm:$0xff]
      %v1898 = vld [vmem:[%s2 + $0x88] sm:$0xff]
      %v1899 = vld [vmem:[%s2 + $0x90] sm:$0xff]
      %v1900 = vld [vmem:[%s2 + $0x98] sm:$0xff]
      %v1901 = vld [vmem:[%s2 + $0xa0] sm:$0xff]
      %v1902 = vld [vmem:[%s2 + $0xa8] sm:$0xff]
      %v1903 = vld [vmem:[%s2 + $0xb0] sm:$0xff]
      %v1904 = vld [vmem:[%s2 + $0xb8] sm:$0xff]
      %v1905 = vld [vmem:[%s2 + $0xc0] sm:$0xff]
      %v1906 = vld [vmem:[%s2 + $0xc8] sm:$0xff]
      %v1907 = vld [vmem:[%s2 + $0xd0] sm:$0xff]
      %v1908 = vld [vmem:[%s2 + $0xd8] sm:$0xff]
      %v1909 = vld [vmem:[%s2 + $0xe0] sm:$0xff]
      %v1910 = vld [vmem:[%s2 + $0xe8] sm:$0xff]
      %v1911 = vld [vmem:[%s2 + $0xf0] sm:$0xff]
      %v1912 = vld [vmem:[%s2 + $0xf8] sm:$0xff]
      %vm1913 = vcmp.gt.f32.partialorder %v1881, 0.0
      %vm1914 = vcmp.gt.f32.partialorder %v1882, 0.0
      %vm1915 = vcmp.gt.f32.partialorder %v1883, 0.0
      %vm1916 = vcmp.gt.f32.partialorder %v1884, 0.0
      %vm1917 = vcmp.gt.f32.partialorder %v1885, 0.0
      %vm1918 = vcmp.gt.f32.partialorder %v1886, 0.0
      %vm1919 = vcmp.gt.f32.partialorder %v1887, 0.0
      %vm1920 = vcmp.gt.f32.partialorder %v1888, 0.0
      %vm1921 = vcmp.gt.f32.partialorder %v1889, 0.0
      %vm1922 = vcmp.gt.f32.partialorder %v1890, 0.0
      %vm1923 = vcmp.gt.f32.partialorder %v1891, 0.0
      %vm1924 = vcmp.gt.f32.partialorder %v1892, 0.0
      %vm1925 = vcmp.gt.f32.partialorder %v1893, 0.0
      %vm1926 = vcmp.gt.f32.partialorder %v1894, 0.0
      %vm1927 = vcmp.gt.f32.partialorder %v1895, 0.0
      %vm1928 = vcmp.gt.f32.partialorder %v1896, 0.0
      %vm1929 = vcmp.gt.f32.partialorder %v1897, 0.0
      %vm1930 = vcmp.gt.f32.partialorder %v1898, 0.0
      %vm1931 = vcmp.gt.f32.partialorder %v1899, 0.0
      %vm1932 = vcmp.gt.f32.partialorder %v1900, 0.0
      %vm1933 = vcmp.gt.f32.partialorder %v1901, 0.0
      %vm1934 = vcmp.gt.f32.partialorder %v1902, 0.0
      %vm1935 = vcmp.gt.f32.partialorder %v1903, 0.0
      %vm1936 = vcmp.gt.f32.partialorder %v1904, 0.0
      %vm1937 = vcmp.gt.f32.partialorder %v1905, 0.0
      %vm1938 = vcmp.gt.f32.partialorder %v1906, 0.0
      %vm1939 = vcmp.gt.f32.partialorder %v1907, 0.0
      %vm1940 = vcmp.gt.f32.partialorder %v1908, 0.0
      %vm1941 = vcmp.gt.f32.partialorder %v1909, 0.0
      %vm1942 = vcmp.gt.f32.partialorder %v1910, 0.0
      %vm1943 = vcmp.gt.f32.partialorder %v1911, 0.0
      %vm1944 = vcmp.gt.f32.partialorder %v1912, 0.0
      %v1945 = vadd.f32 %v1444, 0.5
      %v1946 = vadd.f32 %v1456, 0.5
      %v1947 = vadd.f32 %v1468, 0.5
      %v1948 = vadd.f32 %v1480, 0.5
      %v1949 = vadd.f32 %v1492, 0.5
      %v1950 = vadd.f32 %v1504, 0.5
      %v1951 = vadd.f32 %v1516, 0.5
      %v1952 = vadd.f32 %v1528, 0.5
      %v1953 = vadd.f32 %v1540, 0.5
      %v1954 = vadd.f32 %v1552, 0.5
      %v1955 = vadd.f32 %v1564, 0.5
      %v1956 = vadd.f32 %v1576, 0.5
      %v1957 = vadd.f32 %v1588, 0.5
      %v1958 = vadd.f32 %v1600, 0.5
      %v1959 = vadd.f32 %v1612, 0.5
      %v1960 = vadd.f32 %v1624, 0.5
      %v1961 = vadd.f32 %v1636, 0.5
      %v1962 = vadd.f32 %v1648, 0.5
      %v1963 = vadd.f32 %v1660, 0.5
      %v1964 = vadd.f32 %v1672, 0.5
      %v1965 = vadd.f32 %v1684, 0.5
      %v1966 = vadd.f32 %v1696, 0.5
      %v1967 = vadd.f32 %v1708, 0.5
      %v1968 = vadd.f32 %v1720, 0.5
      %v1969 = vadd.f32 %v1732, 0.5
      %v1970 = vadd.f32 %v1744, 0.5
      %v1971 = vadd.f32 %v1756, 0.5
      %v1972 = vadd.f32 %v1768, 0.5
      %v1973 = vadd.f32 %v1780, 0.5
      %v1974 = vadd.f32 %v1792, 0.5
      %v1975 = vadd.f32 %v1804, 0.5
      %v1976 = vadd.f32 %v1816, 0.5
      %v1977 = vsel %vm1913, %v1945, -1e+09
      %v1978 = vsel %vm1914, %v1946, -1e+09
      %v1979 = vsel %vm1915, %v1947, -1e+09
      %v1980 = vsel %vm1916, %v1948, -1e+09
      %v1981 = vsel %vm1917, %v1949, -1e+09
      %v1982 = vsel %vm1918, %v1950, -1e+09
      %v1983 = vsel %vm1919, %v1951, -1e+09
      %v1984 = vsel %vm1920, %v1952, -1e+09
      %v1985 = vsel %vm1921, %v1953, -1e+09
      %v1986 = vsel %vm1922, %v1954, -1e+09
      %v1987 = vsel %vm1923, %v1955, -1e+09
      %v1988 = vsel %vm1924, %v1956, -1e+09
      %v1989 = vsel %vm1925, %v1957, -1e+09
      %v1990 = vsel %vm1926, %v1958, -1e+09
      %v1991 = vsel %vm1927, %v1959, -1e+09
      %v1992 = vsel %vm1928, %v1960, -1e+09
      %v1993 = vsel %vm1929, %v1961, -1e+09
      %v1994 = vsel %vm1930, %v1962, -1e+09
      %v1995 = vsel %vm1931, %v1963, -1e+09
      %v1996 = vsel %vm1932, %v1964, -1e+09
      %v1997 = vsel %vm1933, %v1965, -1e+09
      %v1998 = vsel %vm1934, %v1966, -1e+09
      %v1999 = vsel %vm1935, %v1967, -1e+09
      %v2000 = vsel %vm1936, %v1968, -1e+09
      %v2001 = vsel %vm1937, %v1969, -1e+09
      %v2002 = vsel %vm1938, %v1970, -1e+09
      %v2003 = vsel %vm1939, %v1971, -1e+09
      %v2004 = vsel %vm1940, %v1972, -1e+09
      %v2005 = vsel %vm1941, %v1973, -1e+09
      %v2006 = vsel %vm1942, %v1974, -1e+09
      %v2007 = vsel %vm1943, %v1975, -1e+09
      %v2008 = vsel %vm1944, %v1976, -1e+09
      %2009 = vst.msk [vmem:[%s5] sm:$0xff] %vm1365, %v1977
      %2010 = vst.msk [vmem:[%s5 + $0x8] sm:$0xff] %vm1365, %v1978
      %2011 = vst.msk [vmem:[%s5 + $0x10] sm:$0xff] %vm1365, %v1979
      %2012 = vst.msk [vmem:[%s5 + $0x18] sm:$0xff] %vm1365, %v1980
      %2013 = vst.msk [vmem:[%s5 + $0x20] sm:$0xff] %vm1365, %v1981
      %2014 = vst.msk [vmem:[%s5 + $0x28] sm:$0xff] %vm1365, %v1982
      %2015 = vst.msk [vmem:[%s5 + $0x30] sm:$0xff] %vm1365, %v1983
      %2016 = vst.msk [vmem:[%s5 + $0x38] sm:$0xff] %vm1365, %v1984
      %2017 = vst.msk [vmem:[%s5 + $0x40] sm:$0xff] %vm1365, %v1985
      %2018 = vst.msk [vmem:[%s5 + $0x48] sm:$0xff] %vm1365, %v1986
      %2019 = vst.msk [vmem:[%s5 + $0x50] sm:$0xff] %vm1365, %v1987
      %2020 = vst.msk [vmem:[%s5 + $0x58] sm:$0xff] %vm1365, %v1988
      %2021 = vst.msk [vmem:[%s5 + $0x60] sm:$0xff] %vm1365, %v1989
      %2022 = vst.msk [vmem:[%s5 + $0x68] sm:$0xff] %vm1365, %v1990
      %2023 = vst.msk [vmem:[%s5 + $0x70] sm:$0xff] %vm1365, %v1991
      %2024 = vst.msk [vmem:[%s5 + $0x78] sm:$0xff] %vm1365, %v1992
      %2025 = vst.msk [vmem:[%s5 + $0x80] sm:$0xff] %vm1365, %v1993
      %2026 = vst.msk [vmem:[%s5 + $0x88] sm:$0xff] %vm1365, %v1994
      %2027 = vst.msk [vmem:[%s5 + $0x90] sm:$0xff] %vm1365, %v1995
      %2028 = vst.msk [vmem:[%s5 + $0x98] sm:$0xff] %vm1365, %v1996
      %2029 = vst.msk [vmem:[%s5 + $0xa0] sm:$0xff] %vm1365, %v1997
      %2030 = vst.msk [vmem:[%s5 + $0xa8] sm:$0xff] %vm1365, %v1998
      %2031 = vst.msk [vmem:[%s5 + $0xb0] sm:$0xff] %vm1365, %v1999
      %2032 = vst.msk [vmem:[%s5 + $0xb8] sm:$0xff] %vm1365, %v2000
      %2033 = vst.msk [vmem:[%s5 + $0xc0] sm:$0xff] %vm1365, %v2001
      %2034 = vst.msk [vmem:[%s5 + $0xc8] sm:$0xff] %vm1365, %v2002
      %2035 = vst.msk [vmem:[%s5 + $0xd0] sm:$0xff] %vm1365, %v2003
      %2036 = vst.msk [vmem:[%s5 + $0xd8] sm:$0xff] %vm1365, %v2004
      %2037 = vst.msk [vmem:[%s5 + $0xe0] sm:$0xff] %vm1365, %v2005
      %2038 = vst.msk [vmem:[%s5 + $0xe8] sm:$0xff] %vm1365, %v2006
      %2039 = vst.msk [vmem:[%s5 + $0xf0] sm:$0xff] %vm1365, %v2007
      %2040 = vst.msk [vmem:[%s5 + $0xf8] sm:$0xff] %vm1365, %v2008
      %v2041 = vadd.f32 %v1444, 0.3
      %v2042 = vadd.f32 %v1456, 0.3
      %v2043 = vadd.f32 %v1468, 0.3
      %v2044 = vadd.f32 %v1480, 0.3
      %v2045 = vadd.f32 %v1492, 0.3
      %v2046 = vadd.f32 %v1504, 0.3
      %v2047 = vadd.f32 %v1516, 0.3
      %v2048 = vadd.f32 %v1528, 0.3
      %v2049 = vadd.f32 %v1540, 0.3
      %v2050 = vadd.f32 %v1552, 0.3
      %v2051 = vadd.f32 %v1564, 0.3
      %v2052 = vadd.f32 %v1576, 0.3
      %v2053 = vadd.f32 %v1588, 0.3
      %v2054 = vadd.f32 %v1600, 0.3
      %v2055 = vadd.f32 %v1612, 0.3
      %v2056 = vadd.f32 %v1624, 0.3
      %v2057 = vadd.f32 %v1636, 0.3
      %v2058 = vadd.f32 %v1648, 0.3
      %v2059 = vadd.f32 %v1660, 0.3
      %v2060 = vadd.f32 %v1672, 0.3
      %v2061 = vadd.f32 %v1684, 0.3
      %v2062 = vadd.f32 %v1696, 0.3
      %v2063 = vadd.f32 %v1708, 0.3
      %v2064 = vadd.f32 %v1720, 0.3
      %v2065 = vadd.f32 %v1732, 0.3
      %v2066 = vadd.f32 %v1744, 0.3
      %v2067 = vadd.f32 %v1756, 0.3
      %v2068 = vadd.f32 %v1768, 0.3
      %v2069 = vadd.f32 %v1780, 0.3
      %v2070 = vadd.f32 %v1792, 0.3
      %v2071 = vadd.f32 %v1804, 0.3
      %v2072 = vadd.f32 %v1816, 0.3
      %v2073 = vsel %vm1913, %v2041, -1e+09
      %v2074 = vsel %vm1914, %v2042, -1e+09
      %v2075 = vsel %vm1915, %v2043, -1e+09
      %v2076 = vsel %vm1916, %v2044, -1e+09
      %v2077 = vsel %vm1917, %v2045, -1e+09
      %v2078 = vsel %vm1918, %v2046, -1e+09
      %v2079 = vsel %vm1919, %v2047, -1e+09
      %v2080 = vsel %vm1920, %v2048, -1e+09
      %v2081 = vsel %vm1921, %v2049, -1e+09
      %v2082 = vsel %vm1922, %v2050, -1e+09
      %v2083 = vsel %vm1923, %v2051, -1e+09
      %v2084 = vsel %vm1924, %v2052, -1e+09
      %v2085 = vsel %vm1925, %v2053, -1e+09
      %v2086 = vsel %vm1926, %v2054, -1e+09
      %v2087 = vsel %vm1927, %v2055, -1e+09
      %v2088 = vsel %vm1928, %v2056, -1e+09
      %v2089 = vsel %vm1929, %v2057, -1e+09
      %v2090 = vsel %vm1930, %v2058, -1e+09
      %v2091 = vsel %vm1931, %v2059, -1e+09
      %v2092 = vsel %vm1932, %v2060, -1e+09
      %v2093 = vsel %vm1933, %v2061, -1e+09
      %v2094 = vsel %vm1934, %v2062, -1e+09
      %v2095 = vsel %vm1935, %v2063, -1e+09
      %v2096 = vsel %vm1936, %v2064, -1e+09
      %v2097 = vsel %vm1937, %v2065, -1e+09
      %v2098 = vsel %vm1938, %v2066, -1e+09
      %v2099 = vsel %vm1939, %v2067, -1e+09
      %v2100 = vsel %vm1940, %v2068, -1e+09
      %v2101 = vsel %vm1941, %v2069, -1e+09
      %v2102 = vsel %vm1942, %v2070, -1e+09
      %v2103 = vsel %vm1943, %v2071, -1e+09
      %v2104 = vsel %vm1944, %v2072, -1e+09
      %2105 = vst.msk [vmem:[%s6] sm:$0xff] %vm1365, %v2073
      %2106 = vst.msk [vmem:[%s6 + $0x8] sm:$0xff] %vm1365, %v2074
      %2107 = vst.msk [vmem:[%s6 + $0x10] sm:$0xff] %vm1365, %v2075
      %2108 = vst.msk [vmem:[%s6 + $0x18] sm:$0xff] %vm1365, %v2076
      %2109 = vst.msk [vmem:[%s6 + $0x20] sm:$0xff] %vm1365, %v2077
      %2110 = vst.msk [vmem:[%s6 + $0x28] sm:$0xff] %vm1365, %v2078
      %2111 = vst.msk [vmem:[%s6 + $0x30] sm:$0xff] %vm1365, %v2079
      %2112 = vst.msk [vmem:[%s6 + $0x38] sm:$0xff] %vm1365, %v2080
      %2113 = vst.msk [vmem:[%s6 + $0x40] sm:$0xff] %vm1365, %v2081
      %2114 = vst.msk [vmem:[%s6 + $0x48] sm:$0xff] %vm1365, %v2082
      %2115 = vst.msk [vmem:[%s6 + $0x50] sm:$0xff] %vm1365, %v2083
      %2116 = vst.msk [vmem:[%s6 + $0x58] sm:$0xff] %vm1365, %v2084
      %2117 = vst.msk [vmem:[%s6 + $0x60] sm:$0xff] %vm1365, %v2085
      %2118 = vst.msk [vmem:[%s6 + $0x68] sm:$0xff] %vm1365, %v2086
      %2119 = vst.msk [vmem:[%s6 + $0x70] sm:$0xff] %vm1365, %v2087
      %2120 = vst.msk [vmem:[%s6 + $0x78] sm:$0xff] %vm1365, %v2088
      %2121 = vst.msk [vmem:[%s6 + $0x80] sm:$0xff] %vm1365, %v2089
      %2122 = vst.msk [vmem:[%s6 + $0x88] sm:$0xff] %vm1365, %v2090
      %2123 = vst.msk [vmem:[%s6 + $0x90] sm:$0xff] %vm1365, %v2091
      %2124 = vst.msk [vmem:[%s6 + $0x98] sm:$0xff] %vm1365, %v2092
      %2125 = vst.msk [vmem:[%s6 + $0xa0] sm:$0xff] %vm1365, %v2093
      %2126 = vst.msk [vmem:[%s6 + $0xa8] sm:$0xff] %vm1365, %v2094
      %2127 = vst.msk [vmem:[%s6 + $0xb0] sm:$0xff] %vm1365, %v2095
      %2128 = vst.msk [vmem:[%s6 + $0xb8] sm:$0xff] %vm1365, %v2096
      %2129 = vst.msk [vmem:[%s6 + $0xc0] sm:$0xff] %vm1365, %v2097
      %2130 = vst.msk [vmem:[%s6 + $0xc8] sm:$0xff] %vm1365, %v2098
      %2131 = vst.msk [vmem:[%s6 + $0xd0] sm:$0xff] %vm1365, %v2099
      %2132 = vst.msk [vmem:[%s6 + $0xd8] sm:$0xff] %vm1365, %v2100
      %2133 = vst.msk [vmem:[%s6 + $0xe0] sm:$0xff] %vm1365, %v2101
      %2134 = vst.msk [vmem:[%s6 + $0xe8] sm:$0xff] %vm1365, %v2102
      %2135 = vst.msk [vmem:[%s6 + $0xf0] sm:$0xff] %vm1365, %v2103
      %2136 = vst.msk [vmem:[%s6 + $0xf8] sm:$0xff] %vm1365, %v2104
      %v2137 = vld [vmem:[%s3] sm:$0x3]
      %vm2138 = vcmp.gt.f32.partialorder %v2137, 0.0
      %v2141 = vrot.slane %v1865, 7
      %vm2142 = vcmask 1040384
      %v2143 = vsel %vm2142, %v1833, %v2141
      %v2145 = vsel %vm2138, %v2143, 1e+09
      %v2146 = vlaneseq
      %vm2147 = vcmp.ge.s32.totalorder %v2146, 0
      %vm2148 = vcmp.lt.s32.totalorder %v2146, 256
      %vm2149 = vmand %vm2147, %vm2148
      %2150 = vst.msk [vmem:[#allocation6] sm:$0x3] %vm2149, %v2145
      %v2151 = vld [vmem:[%s4] sm:$0x3]
      %vm2152 = vcmp.gt.f32.partialorder %v2151, 0.0
      %v2153 = vsel %vm2152, %v2143, 1e+09
      %2154 = vst.msk [vmem:[#allocation7] sm:$0x3] %vm2149, %v2153
    $region33: #{tpu_custom_call.1} parent=1 // pred_fallthru
      _
    // Predicated region
    $region34: #{tpu_custom_call.1} parent=1 // pred_check
      _
    $region35: #{tpu_custom_call.1} parent=1 // pred_check_branch
      %2156 = sbr.rel (0) target = $region37
    $region36: #{tpu_custom_call.1} parent=1 // pred_region
      _
    $region37: #{tpu_custom_call.1} parent=1 // pred_fallthru
      _
    // Predicated region
    $region38: #{tpu_custom_call.1} parent=1 // pred_check
      _
    $region39: #{tpu_custom_call.1} parent=1 // pred_check_branch
      %2158 = sbr.rel (0) target = $region41
    $region40: #{tpu_custom_call.1} parent=1 // pred_region
      _
    $region41: #{tpu_custom_call.1} parent=1 // pred_fallthru
      _
    // Predicated region
    $region42: #{tpu_custom_call.1} parent=1 // pred_check
      _
    $region43: #{tpu_custom_call.1} parent=1 // pred_check_branch
      %2160 = sbr.rel (0) target = $region45
    $region44: #{tpu_custom_call.1} parent=1 // pred_region
      %2162 = vsyncadd [#allocation5], 0
      %s2164 = sshll.u32 [#allocation6], 4
      %s2165 = int_to_ptr.vmem [resolvable:$true] %s2164
      %s2166 = sshll.u32 %s7, 4
      %s2167 = int_to_ptr.hbm [resolvable:$true] %s2166
      %2169 = dma.vmem_to_hbm [thread:$0]  %s2165, 32, %s2167, [#allocation5]
    $region45: #{tpu_custom_call.1} parent=1 // pred_fallthru
      _
    // Predicated region
    $region46: #{tpu_custom_call.1} parent=1 // pred_check
      _
    $region47: #{tpu_custom_call.1} parent=1 // pred_check_branch
      %2171 = sbr.rel (0) target = $region49
    $region48: #{tpu_custom_call.1} parent=1 // pred_region
      %2173 = vsyncadd [#allocation8], 0
      %s2175 = sshll.u32 [#allocation7], 4
      %s2176 = int_to_ptr.vmem [resolvable:$true] %s2175
      %s2177 = sshll.u32 %s8, 4
      %s2178 = int_to_ptr.hbm [resolvable:$true] %s2177
      %2180 = dma.vmem_to_hbm [thread:$0]  %s2176, 32, %s2178, [#allocation8]
    $region49: #{tpu_custom_call.1} parent=1 // pred_fallthru
      _
    // Predicated region
    $region50: #{tpu_custom_call.1} parent=1 // pred_check
      _
    $region51: #{tpu_custom_call.1} parent=1 // pred_check_branch
      %2182 = sbr.rel (0) target = $region53
    $region52: #{tpu_custom_call.1} parent=1 // pred_region
      _
    $region53: #{tpu_custom_call.1} parent=1 // pred_fallthru
      _
    // Predicated region
    $region54: #{tpu_custom_call.1} parent=1 // pred_check
      _
    $region55: #{tpu_custom_call.1} parent=1 // pred_check_branch
      %2184 = sbr.rel (0) target = $region57
    $region56: #{tpu_custom_call.1} parent=1 // pred_region
      _
    $region57: #{tpu_custom_call.1} parent=1 // pred_fallthru
      _
    // Predicated region
    $region58: #{tpu_custom_call.1} parent=1 // pred_check
      _
    $region59: #{tpu_custom_call.1} parent=1 // pred_check_branch
      %2186 = sbr.rel (0) target = $region61
    $region60: #{tpu_custom_call.1} parent=1 // pred_region
      %2188 = dma.done [#allocation5], 32
    $region61: #{tpu_custom_call.1} parent=1 // pred_fallthru
      _
    // Predicated region
    $region62: #{tpu_custom_call.1} parent=1 // pred_check
      _
    $region63: #{tpu_custom_call.1} parent=1 // pred_check_branch
      %2190 = sbr.rel (0) target = $region65
    $region64: #{tpu_custom_call.1} parent=1 // pred_region
      %2192 = dma.done [#allocation8], 32
    $region65: #{tpu_custom_call.1} parent=1 // pred_fallthru
      _
    %2193 = vsyncpa [#allocation4], 1
    %2194 = vsyncpa [#allocation5], 1
    %2195 = vsyncpa [#allocation8], 1

</llo_original>
